<compile_context>
chip_gen: v7x
topology: tpu7x:2x2x1
jax: 0.10.0
libtpu: 0.0.40
codegen_flags: <defaults>
</compile_context>

<pallas_src>
import jax
import jax.numpy as jnp
from jax import lax
from jax.experimental import pallas as pl
from jax.experimental.pallas import tpu as pltpu

# ----------------------------- config (small, deterministic) -----------------
B = 4            # batch
T = 8            # sequence length
V = 50           # vocab size
D = 32           # embedding dim
HID = 64         # args.hidden_dim
H2 = HID // 2    # per-direction LSTM hidden size
C = 4            # args.class_num
G = 4 * H2       # fused gate width [i,f,g,o] = 128 lanes = one vreg
B2 = 2 * B       # fused batch: rows 0..B-1 = forward dir, rows B..2B-1 = backward dir


# ----------------------------- Pallas kernel ---------------------------------
def lstm_text_kernel(ids_ref, y_ref, embed_ref,
                     wih_ref, whh_ref, b_ref,
                     wout_ref, bout_ref,
                     feat_ref, logit_ref, loss_ref):
    # ids_ref  : (T*2B, 1) int32; row p = s*2B + r  ->  token for fused-batch row r at step s
    #            (rows 0..B-1 of each step block: forward dir / original order;
    #             rows B..2B-1: backward dir / time-reversed order)
    # embed_ref: (V, D)
    # wih_ref  : (D, 2G)  = [W_ih_fwd | W_ih_bwd]   (pre-transposed, lane-concatenated)
    # whh_ref  : (H2, 2G) = [W_hh_fwd | W_hh_bwd]
    # b_ref    : (1, 2G)  = [b_fwd | b_bwd]         (b_ih + b_hh summed per direction)
    TB2 = ids_ref.shape[0]
    ids = ids_ref[...]                                                    # (T*2B, 1) int32

    # ---- embedding gather as a one-hot matmul (outside the recurrence) ----
    onehot = (lax.broadcasted_iota(jnp.int32, (TB2, V), 1) == ids).astype(jnp.float32)
    emb_all = jnp.dot(onehot, embed_ref[...],
                      preferred_element_type=jnp.float32)                 # (T*2B, D)

    # ---- input-gate contributions for all steps / both dirs, bias folded in ----
    gx_full = (jnp.dot(emb_all, wih_ref[...], preferred_element_type=jnp.float32)
               + b_ref[...])                                              # (T*2B, 2G)
    row_iota = lax.broadcasted_iota(jnp.int32, (TB2, 1), 0)
    is_fwd_col = (row_iota % B2) < B                                      # (T*2B, 1)
    # vreg-aligned 128-lane halves -> per-row direction select
    gx = jnp.where(is_fwd_col, gx_full[:, :G], gx_full[:, G:])            # (T*2B, G)

    mask = ids != 0                                                       # (T*2B, 1) bool

    # ---- fused bidirectional recurrence, fully unrolled (T static) ----
    whh = whh_ref[...]                                                    # (H2, 2G)
    is_fwd_row = lax.broadcasted_iota(jnp.int32, (B2, 1), 0) < B          # (2B, 1)
    lane = lax.broadcasted_iota(jnp.int32, (B2, G), 1)
    is_g_lane = (lane >= 2 * H2) & (lane < 3 * H2)                        # tanh-gate lanes

    h = jnp.zeros((B2, H2), jnp.float32)
    c = jnp.zeros((B2, H2), jnp.float32)
    for s in range(T):                                                    # unrolled
        gh_full = jnp.dot(h, whh, preferred_element_type=jnp.float32)     # (2B, 2G): 1 MXU op
        gh = jnp.where(is_fwd_row, gh_full[:, :G], gh_full[:, G:])        # (2B, G)
        gates = gh + gx[s * B2:(s + 1) * B2, :]                           # (2B, G) one vreg

        # full-vreg nonlinearities, then lane-select tanh for the g gate
        sig = jax.nn.sigmoid(gates)
        th = jnp.tanh(gates)
        act = jnp.where(is_g_lane, th, sig)                               # (2B, G)

        i_g = act[:, 0 * H2:1 * H2]
        f_g = act[:, 1 * H2:2 * H2]
        g_g = act[:, 2 * H2:3 * H2]
        o_g = act[:, 3 * H2:4 * H2]
        c_new = f_g * c + i_g * g_g
        h_new = o_g * jnp.tanh(c_new)

        # packed-sequence semantics: only advance state on real tokens
        m = mask[s * B2:(s + 1) * B2, :]                                  # (2B, 1)
        h = jnp.where(m, h_new, h)
        c = jnp.where(m, c_new, c)

    # ---- head: feature_out == hidden.transpose(1,0)[:, -2:].reshape(B, -1) ----
    feat = jnp.concatenate([h[:B, :], h[B:, :]], axis=1)                  # (B, HID)
    feat_ref[...] = feat

    logit = (jnp.dot(feat, wout_ref[...], preferred_element_type=jnp.float32)
             + bout_ref[...])                                             # (B, C)
    logit_ref[...] = logit

    # CrossEntropyLoss(reduction='mean', ignore_index=-1)
    y = y_ref[...]                                                        # (B, 1) int32
    Ck = logit.shape[-1]
    mmax = jnp.max(logit, axis=-1, keepdims=True)
    lse = mmax + jnp.log(jnp.sum(jnp.exp(logit - mmax), axis=-1, keepdims=True))
    cls_iota = lax.broadcasted_iota(jnp.int32, (B, Ck), 1)
    onehot_y = (cls_iota == y).astype(jnp.float32)
    logp_tgt = jnp.sum(onehot_y * logit, axis=-1, keepdims=True) - lse    # (B, 1)
    valid = (y != -1).astype(jnp.float32)                                 # (B, 1)
    num = jnp.sum(-logp_tgt * valid, axis=0, keepdims=True)               # (1, 1)
    den = jnp.maximum(jnp.sum(valid, axis=0, keepdims=True), 1.0)         # (1, 1)
    loss_ref[...] = num / den


def _vmem():
    return pl.BlockSpec(memory_space=pltpu.MemorySpace.VMEM)


@jax.jit
def lstm_text_forward(x, y, params):
    """x: (B, T) int32 token ids (0 = pad), y: (B,) int32 labels (-1 = ignore)."""
    # Tiny int-only glue (2*B*T ids, ~0.5 KB): fused-direction, step-major id column.
    ids_fused = jnp.concatenate([x, x[:, ::-1]], axis=0)                  # (2B, T)
    ids_col = jnp.transpose(ids_fused).reshape(T * B2, 1).astype(jnp.int32)  # (T*2B, 1)
    y2d = y.astype(jnp.int32)[:, None]                                    # (B, 1)

    # One-time weight packing (lane-concat per direction).
    wih_cat = jnp.concatenate([params["wih_f"], params["wih_b"]], axis=1)  # (D, 2G)
    whh_cat = jnp.concatenate([params["whh_f"], params["whh_b"]], axis=1)  # (H2, 2G)
    b_cat = jnp.concatenate([params["b_f"], params["b_b"]], axis=1)        # (1, 2G)

    out_shapes = (
        jax.ShapeDtypeStruct((B, HID), jnp.float32),                      # feature_out
        jax.ShapeDtypeStruct((B, C), jnp.float32),                        # logit
        jax.ShapeDtypeStruct((1, 1), jnp.float32),                        # loss (mean)
    )
    feat, logit, loss = pl.pallas_call(
        lstm_text_kernel,
        out_shape=out_shapes,
        in_specs=[_vmem() for _ in range(8)],
        out_specs=(_vmem(), _vmem(), _vmem()),
    )(ids_col, y2d, params["embed"], wih_cat, whh_cat, b_cat,
      params["wout"], params["bout"])
    return feat, logit, loss[0, 0]


# ----------------------------- pure-JAX reference ----------------------------
def ref_forward(x, y, params):
    emb = params["embed"][x]                     # (B, T, D)
    mask = (x != 0).astype(jnp.float32)          # (B, T)

    def run_dir(wih, whh, b, reverse):
        h = jnp.zeros((B, H2), jnp.float32)
        c = jnp.zeros((B, H2), jnp.float32)
        t_order = range(T - 1, -1, -1) if reverse else range(T)
        for t in t_order:
            x_t = emb[:, t, :]
            m_t = mask[:, t][:, None]
            gates = x_t @ wih + h @ whh + b
            i_g = jax.nn.sigmoid(gates[:, 0 * H2:1 * H2])
            f_g = jax.nn.sigmoid(gates[:, 1 * H2:2 * H2])
            g_g = jnp.tanh(gates[:, 2 * H2:3 * H2])
            o_g = jax.nn.sigmoid(gates[:, 3 * H2:4 * H2])
            c_new = f_g * c + i_g * g_g
            h_new = o_g * jnp.tanh(c_new)
            h = m_t * h_new + (1.0 - m_t) * h
            c = m_t * c_new + (1.0 - m_t) * c
        return h

    h_f = run_dir(params["wih_f"], params["whh_f"], params["b_f"], False)
    h_b = run_dir(params["wih_b"], params["whh_b"], params["b_b"], True)
    feat = jnp.concatenate([h_f, h_b], axis=-1)
    logit = feat @ params["wout"] + params["bout"]
    lse = jax.nn.logsumexp(logit, axis=-1)
    logp = logit[jnp.arange(B), y] - lse
    valid = (y != -1).astype(jnp.float32)
    loss = jnp.sum(-logp * valid) / jnp.maximum(jnp.sum(valid), 1.0)
    return feat, logit, loss


# ----------------------------- main -------------------------------------------
if __name__ == "__main__":
    key = jax.random.PRNGKey(0)
    keys = jax.random.split(key, 12)

    def u(k, shape, scale=0.1):
        return jax.random.uniform(k, shape, jnp.float32, -scale, scale)

    params = {
        "embed": u(keys[0], (V, D), 0.5),
        "wih_f": u(keys[1], (D, 4 * H2)),   # transposed PyTorch weight_ih_l0
        "whh_f": u(keys[2], (H2, 4 * H2)),  # transposed PyTorch weight_hh_l0
        "b_f":   u(keys[3], (1, 4 * H2)),   # b_ih_l0 + b_hh_l0 combined
        "wih_b": u(keys[4], (D, 4 * H2)),
        "whh_b": u(keys[5], (H2, 4 * H2)),
        "b_b":   u(keys[6], (1, 4 * H2)),
        "wout":  u(keys[7], (HID, C)),      # transposed final_prediction.weight
        "bout":  u(keys[8], (1, C)),
    }

    # Token ids: nonzero up to each length, then pad (0), matching pad_idx=0.
    lengths = jnp.array([8, 5, 3, 6], dtype=jnp.int32)
    rand_ids = jax.random.randint(keys[9], (B, T), 1, V, dtype=jnp.int32)
    pos = jnp.arange(T)[None, :]
    x = jnp.where(pos < lengths[:, None], rand_ids, 0).astype(jnp.int32)
    y = jax.random.randint(keys[10], (B,), 0, C, dtype=jnp.int32)

    feat, logit, loss = lstm_text_forward(x, y, params)
    jax.block_until_ready((feat, logit, loss))

    feat_r, logit_r, loss_r = ref_forward(x, y, params)
    assert jnp.allclose(feat, feat_r, atol=1e-3, rtol=1e-3)
    assert jnp.allclose(logit, logit_r, atol=1e-3, rtol=1e-3)
    assert jnp.allclose(loss, loss_r, atol=1e-3, rtol=1e-3)

    print("KERNEL_OK")
</pallas_src>

<mosaic_0001>
module attributes {stable_mosaic.version = 11 : i64} {
  func.func @lstm_text_kernel(%arg0: memref<64x1xi32, #tpu.memory_space<vmem>>, %arg1: memref<4x1xi32, #tpu.memory_space<vmem>>, %arg2: memref<50x32xf32, #tpu.memory_space<vmem>>, %arg3: memref<32x256xf32, #tpu.memory_space<vmem>>, %arg4: memref<32x256xf32, #tpu.memory_space<vmem>>, %arg5: memref<1x256xf32, #tpu.memory_space<vmem>>, %arg6: memref<64x4xf32, #tpu.memory_space<vmem>>, %arg7: memref<1x4xf32, #tpu.memory_space<vmem>>, %arg8: memref<4x64xf32, #tpu.memory_space<vmem>>, %arg9: memref<4x4xf32, #tpu.memory_space<vmem>>, %arg10: memref<1x1xf32, #tpu.memory_space<vmem>>) attributes {dimension_semantics = [], scalar_prefetch = 0 : i64, scratch_operands = 0 : i64, tpu.core_type = #tpu.core_type<tc>} {
    %c0 = arith.constant 0 : index
    %c0_0 = arith.constant 0 : index
    %0 = vector.load %arg0[%c0, %c0_0] : memref<64x1xi32, #tpu.memory_space<vmem>>, vector<64x1xi32>
    %1 = tpu.iota {dimensions = array<i32: 1>} : vector<64x50xi32>
    %2 = vector.broadcast %0 : vector<64x1xi32> to vector<64x50xi32>
    %3 = arith.cmpi eq, %1, %2 : vector<64x50xi32>
    %4 = arith.extui %3 : vector<64x50xi1> to vector<64x50xi32>
    %5 = arith.sitofp %4 : vector<64x50xi32> to vector<64x50xf32>
    %c0_1 = arith.constant 0 : index
    %c0_2 = arith.constant 0 : index
    %6 = vector.load %arg2[%c0_1, %c0_2] : memref<50x32xf32, #tpu.memory_space<vmem>>, vector<50x32xf32>
    %cst = arith.constant dense<0.000000e+00> : vector<64x32xf32>
    %7 = tpu.matmul %5, %6, %cst {dimension_numbers = #tpu.dot_dimension_numbers<[1], [0], [0], [1], [0, 0, 1, 1], [], []>} : vector<64x50xf32>, vector<50x32xf32>, vector<64x32xf32> -> vector<64x32xf32>
    %c0_3 = arith.constant 0 : index
    %c0_4 = arith.constant 0 : index
    %8 = vector.load %arg3[%c0_3, %c0_4] : memref<32x256xf32, #tpu.memory_space<vmem>>, vector<32x256xf32>
    %cst_5 = arith.constant dense<0.000000e+00> : vector<64x256xf32>
    %9 = tpu.matmul %7, %8, %cst_5 {dimension_numbers = #tpu.dot_dimension_numbers<[1], [0], [0], [1], [0, 0, 1, 1], [], []>} : vector<64x32xf32>, vector<32x256xf32>, vector<64x256xf32> -> vector<64x256xf32>
    %c0_6 = arith.constant 0 : index
    %c0_7 = arith.constant 0 : index
    %10 = vector.load %arg5[%c0_6, %c0_7] : memref<1x256xf32, #tpu.memory_space<vmem>>, vector<1x256xf32>
    %11 = vector.broadcast %10 : vector<1x256xf32> to vector<64x256xf32>
    %12 = arith.addf %9, %11 : vector<64x256xf32>
    %13 = tpu.iota {dimensions = array<i32: 0>} : vector<64x1xi32>
    %c8_i32 = arith.constant 8 : i32
    %c0_i32 = arith.constant 0 : i32
    %14 = arith.cmpi eq, %c8_i32, %c0_i32 : i32
    %c1_i32 = arith.constant 1 : i32
    %15 = arith.select %14, %c1_i32, %c8_i32 : i32
    %16 = vector.broadcast %15 : i32 to vector<64x1xi32>
    %17 = arith.remsi %13, %16 : vector<64x1xi32>
    %c0_i32_8 = arith.constant 0 : i32
    %18 = vector.broadcast %c0_i32_8 : i32 to vector<64x1xi32>
    %19 = arith.cmpi ne, %17, %18 : vector<64x1xi32>
    %c0_i32_9 = arith.constant 0 : i32
    %20 = vector.broadcast %c0_i32_9 : i32 to vector<64x1xi32>
    %21 = arith.cmpi slt, %17, %20 : vector<64x1xi32>
    %c0_i32_10 = arith.constant 0 : i32
    %22 = arith.cmpi slt, %15, %c0_i32_10 : i32
    %23 = vector.broadcast %22 : i1 to vector<64x1xi1>
    %24 = vector.broadcast %23 : vector<64x1xi1> to vector<64x1xi1>
    %25 = arith.xori %21, %24 : vector<64x1xi1>
    %26 = arith.andi %25, %19 : vector<64x1xi1>
    %27 = vector.broadcast %15 : i32 to vector<64x1xi32>
    %28 = arith.addi %17, %27 : vector<64x1xi32>
    %29 = arith.select %26, %28, %17 : vector<64x1xi1>, vector<64x1xi32>
    %c4_i32 = arith.constant 4 : i32
    %30 = vector.broadcast %c4_i32 : i32 to vector<64x1xi32>
    %31 = arith.cmpi slt, %29, %30 : vector<64x1xi32>
    %32 = vector.extract_strided_slice %12 {offsets = [0, 0], sizes = [64, 128], strides = [1, 1]} : vector<64x256xf32> to vector<64x128xf32>
    %33 = vector.extract_strided_slice %12 {offsets = [0, 128], sizes = [64, 128], strides = [1, 1]} : vector<64x256xf32> to vector<64x128xf32>
    %34 = vector.shape_cast %31 : vector<64x1xi1> to vector<64x1xi1>
    %35 = vector.broadcast %34 : vector<64x1xi1> to vector<64x128xi1>
    %36 = arith.select %35, %32, %33 : vector<64x128xi1>, vector<64x128xf32>
    %c0_i32_11 = arith.constant 0 : i32
    %37 = vector.broadcast %c0_i32_11 : i32 to vector<64x1xi32>
    %38 = arith.cmpi ne, %0, %37 : vector<64x1xi32>
    %c0_12 = arith.constant 0 : index
    %c0_13 = arith.constant 0 : index
    %39 = vector.load %arg4[%c0_12, %c0_13] : memref<32x256xf32, #tpu.memory_space<vmem>>, vector<32x256xf32>
    %40 = tpu.iota {dimensions = array<i32: 0>} : vector<8x1xi32>
    %c4_i32_14 = arith.constant 4 : i32
    %41 = vector.broadcast %c4_i32_14 : i32 to vector<8x1xi32>
    %42 = arith.cmpi slt, %40, %41 : vector<8x1xi32>
    %43 = tpu.iota {dimensions = array<i32: 1>} : vector<8x128xi32>
    %c64_i32 = arith.constant 64 : i32
    %44 = vector.broadcast %c64_i32 : i32 to vector<8x128xi32>
    %45 = arith.cmpi sge, %43, %44 : vector<8x128xi32>
    %c96_i32 = arith.constant 96 : i32
    %46 = vector.broadcast %c96_i32 : i32 to vector<8x128xi32>
    %47 = arith.cmpi slt, %43, %46 : vector<8x128xi32>
    %48 = arith.andi %45, %47 : vector<8x128xi1>
    %cst_15 = arith.constant 0.000000e+00 : f32
    %49 = vector.broadcast %cst_15 : f32 to vector<8x32xf32>
    %cst_16 = arith.constant 0.000000e+00 : f32
    %50 = vector.broadcast %cst_16 : f32 to vector<8x32xf32>
    %cst_17 = arith.constant dense<0.000000e+00> : vector<8x256xf32>
    %51 = tpu.matmul %49, %39, %cst_17 {dimension_numbers = #tpu.dot_dimension_numbers<[1], [0], [0], [1], [0, 0, 1, 1], [], []>} : vector<8x32xf32>, vector<32x256xf32>, vector<8x256xf32> -> vector<8x256xf32>
    %52 = vector.extract_strided_slice %51 {offsets = [0, 0], sizes = [8, 128], strides = [1, 1]} : vector<8x256xf32> to vector<8x128xf32>
    %53 = vector.extract_strided_slice %51 {offsets = [0, 128], sizes = [8, 128], strides = [1, 1]} : vector<8x256xf32> to vector<8x128xf32>
    %54 = vector.shape_cast %42 : vector<8x1xi1> to vector<8x1xi1>
    %55 = vector.broadcast %54 : vector<8x1xi1> to vector<8x128xi1>
    %56 = arith.select %55, %52, %53 : vector<8x128xi1>, vector<8x128xf32>
    %57 = vector.extract_strided_slice %36 {offsets = [0, 0], sizes = [8, 128], strides = [1, 1]} : vector<64x128xf32> to vector<8x128xf32>
    %58 = arith.addf %56, %57 : vector<8x128xf32>
    %59 = arith.negf %58 : vector<8x128xf32>
    %60 = math.exp %59 : vector<8x128xf32>
    %cst_18 = arith.constant 1.000000e+00 : f32
    %61 = vector.broadcast %cst_18 : f32 to vector<8x128xf32>
    %62 = arith.addf %61, %60 : vector<8x128xf32>
    %63 = arith.divf %61, %62 : vector<8x128xf32>
    %64 = math.tanh %58 : vector<8x128xf32>
    %65 = arith.select %48, %64, %63 : vector<8x128xi1>, vector<8x128xf32>
    %66 = vector.extract_strided_slice %65 {offsets = [0, 0], sizes = [8, 32], strides = [1, 1]} : vector<8x128xf32> to vector<8x32xf32>
    %67 = vector.extract_strided_slice %65 {offsets = [0, 32], sizes = [8, 32], strides = [1, 1]} : vector<8x128xf32> to vector<8x32xf32>
    %68 = vector.extract_strided_slice %65 {offsets = [0, 64], sizes = [8, 32], strides = [1, 1]} : vector<8x128xf32> to vector<8x32xf32>
    %69 = vector.extract_strided_slice %65 {offsets = [0, 96], sizes = [8, 32], strides = [1, 1]} : vector<8x128xf32> to vector<8x32xf32>
    %70 = arith.mulf %67, %50 : vector<8x32xf32>
    %71 = arith.mulf %66, %68 : vector<8x32xf32>
    %72 = arith.addf %70, %71 : vector<8x32xf32>
    %73 = math.tanh %72 : vector<8x32xf32>
    %74 = arith.mulf %69, %73 : vector<8x32xf32>
    %75 = vector.extract_strided_slice %38 {offsets = [0, 0], sizes = [8, 1], strides = [1, 1]} : vector<64x1xi1> to vector<8x1xi1>
    %76 = vector.shape_cast %75 : vector<8x1xi1> to vector<8x1xi1>
    %77 = vector.broadcast %76 : vector<8x1xi1> to vector<8x32xi1>
    %78 = arith.select %77, %74, %49 : vector<8x32xi1>, vector<8x32xf32>
    %79 = vector.shape_cast %75 : vector<8x1xi1> to vector<8x1xi1>
    %80 = vector.broadcast %79 : vector<8x1xi1> to vector<8x32xi1>
    %81 = arith.select %80, %72, %50 : vector<8x32xi1>, vector<8x32xf32>
    %cst_19 = arith.constant dense<0.000000e+00> : vector<8x256xf32>
    %82 = tpu.matmul %78, %39, %cst_19 {dimension_numbers = #tpu.dot_dimension_numbers<[1], [0], [0], [1], [0, 0, 1, 1], [], []>} : vector<8x32xf32>, vector<32x256xf32>, vector<8x256xf32> -> vector<8x256xf32>
    %83 = vector.extract_strided_slice %82 {offsets = [0, 0], sizes = [8, 128], strides = [1, 1]} : vector<8x256xf32> to vector<8x128xf32>
    %84 = vector.extract_strided_slice %82 {offsets = [0, 128], sizes = [8, 128], strides = [1, 1]} : vector<8x256xf32> to vector<8x128xf32>
    %85 = vector.shape_cast %42 : vector<8x1xi1> to vector<8x1xi1>
    %86 = vector.broadcast %85 : vector<8x1xi1> to vector<8x128xi1>
    %87 = arith.select %86, %83, %84 : vector<8x128xi1>, vector<8x128xf32>
    %88 = vector.extract_strided_slice %36 {offsets = [8, 0], sizes = [8, 128], strides = [1, 1]} : vector<64x128xf32> to vector<8x128xf32>
    %89 = arith.addf %87, %88 : vector<8x128xf32>
    %90 = arith.negf %89 : vector<8x128xf32>
    %91 = math.exp %90 : vector<8x128xf32>
    %cst_20 = arith.constant 1.000000e+00 : f32
    %92 = vector.broadcast %cst_20 : f32 to vector<8x128xf32>
    %93 = arith.addf %92, %91 : vector<8x128xf32>
    %94 = arith.divf %92, %93 : vector<8x128xf32>
    %95 = math.tanh %89 : vector<8x128xf32>
    %96 = arith.select %48, %95, %94 : vector<8x128xi1>, vector<8x128xf32>
    %97 = vector.extract_strided_slice %96 {offsets = [0, 0], sizes = [8, 32], strides = [1, 1]} : vector<8x128xf32> to vector<8x32xf32>
    %98 = vector.extract_strided_slice %96 {offsets = [0, 32], sizes = [8, 32], strides = [1, 1]} : vector<8x128xf32> to vector<8x32xf32>
    %99 = vector.extract_strided_slice %96 {offsets = [0, 64], sizes = [8, 32], strides = [1, 1]} : vector<8x128xf32> to vector<8x32xf32>
    %100 = vector.extract_strided_slice %96 {offsets = [0, 96], sizes = [8, 32], strides = [1, 1]} : vector<8x128xf32> to vector<8x32xf32>
    %101 = arith.mulf %98, %81 : vector<8x32xf32>
    %102 = arith.mulf %97, %99 : vector<8x32xf32>
    %103 = arith.addf %101, %102 : vector<8x32xf32>
    %104 = math.tanh %103 : vector<8x32xf32>
    %105 = arith.mulf %100, %104 : vector<8x32xf32>
    %106 = vector.extract_strided_slice %38 {offsets = [8, 0], sizes = [8, 1], strides = [1, 1]} : vector<64x1xi1> to vector<8x1xi1>
    %107 = vector.shape_cast %106 : vector<8x1xi1> to vector<8x1xi1>
    %108 = vector.broadcast %107 : vector<8x1xi1> to vector<8x32xi1>
    %109 = arith.select %108, %105, %78 : vector<8x32xi1>, vector<8x32xf32>
    %110 = vector.shape_cast %106 : vector<8x1xi1> to vector<8x1xi1>
    %111 = vector.broadcast %110 : vector<8x1xi1> to vector<8x32xi1>
    %112 = arith.select %111, %103, %81 : vector<8x32xi1>, vector<8x32xf32>
    %cst_21 = arith.constant dense<0.000000e+00> : vector<8x256xf32>
    %113 = tpu.matmul %109, %39, %cst_21 {dimension_numbers = #tpu.dot_dimension_numbers<[1], [0], [0], [1], [0, 0, 1, 1], [], []>} : vector<8x32xf32>, vector<32x256xf32>, vector<8x256xf32> -> vector<8x256xf32>
    %114 = vector.extract_strided_slice %113 {offsets = [0, 0], sizes = [8, 128], strides = [1, 1]} : vector<8x256xf32> to vector<8x128xf32>
    %115 = vector.extract_strided_slice %113 {offsets = [0, 128], sizes = [8, 128], strides = [1, 1]} : vector<8x256xf32> to vector<8x128xf32>
    %116 = vector.shape_cast %42 : vector<8x1xi1> to vector<8x1xi1>
    %117 = vector.broadcast %116 : vector<8x1xi1> to vector<8x128xi1>
    %118 = arith.select %117, %114, %115 : vector<8x128xi1>, vector<8x128xf32>
    %119 = vector.extract_strided_slice %36 {offsets = [16, 0], sizes = [8, 128], strides = [1, 1]} : vector<64x128xf32> to vector<8x128xf32>
    %120 = arith.addf %118, %119 : vector<8x128xf32>
    %121 = arith.negf %120 : vector<8x128xf32>
    %122 = math.exp %121 : vector<8x128xf32>
    %cst_22 = arith.constant 1.000000e+00 : f32
    %123 = vector.broadcast %cst_22 : f32 to vector<8x128xf32>
    %124 = arith.addf %123, %122 : vector<8x128xf32>
    %125 = arith.divf %123, %124 : vector<8x128xf32>
    %126 = math.tanh %120 : vector<8x128xf32>
    %127 = arith.select %48, %126, %125 : vector<8x128xi1>, vector<8x128xf32>
    %128 = vector.extract_strided_slice %127 {offsets = [0, 0], sizes = [8, 32], strides = [1, 1]} : vector<8x128xf32> to vector<8x32xf32>
    %129 = vector.extract_strided_slice %127 {offsets = [0, 32], sizes = [8, 32], strides = [1, 1]} : vector<8x128xf32> to vector<8x32xf32>
    %130 = vector.extract_strided_slice %127 {offsets = [0, 64], sizes = [8, 32], strides = [1, 1]} : vector<8x128xf32> to vector<8x32xf32>
    %131 = vector.extract_strided_slice %127 {offsets = [0, 96], sizes = [8, 32], strides = [1, 1]} : vector<8x128xf32> to vector<8x32xf32>
    %132 = arith.mulf %129, %112 : vector<8x32xf32>
    %133 = arith.mulf %128, %130 : vector<8x32xf32>
    %134 = arith.addf %132, %133 : vector<8x32xf32>
    %135 = math.tanh %134 : vector<8x32xf32>
    %136 = arith.mulf %131, %135 : vector<8x32xf32>
    %137 = vector.extract_strided_slice %38 {offsets = [16, 0], sizes = [8, 1], strides = [1, 1]} : vector<64x1xi1> to vector<8x1xi1>
    %138 = vector.shape_cast %137 : vector<8x1xi1> to vector<8x1xi1>
    %139 = vector.broadcast %138 : vector<8x1xi1> to vector<8x32xi1>
    %140 = arith.select %139, %136, %109 : vector<8x32xi1>, vector<8x32xf32>
    %141 = vector.shape_cast %137 : vector<8x1xi1> to vector<8x1xi1>
    %142 = vector.broadcast %141 : vector<8x1xi1> to vector<8x32xi1>
    %143 = arith.select %142, %134, %112 : vector<8x32xi1>, vector<8x32xf32>
    %cst_23 = arith.constant dense<0.000000e+00> : vector<8x256xf32>
    %144 = tpu.matmul %140, %39, %cst_23 {dimension_numbers = #tpu.dot_dimension_numbers<[1], [0], [0], [1], [0, 0, 1, 1], [], []>} : vector<8x32xf32>, vector<32x256xf32>, vector<8x256xf32> -> vector<8x256xf32>
    %145 = vector.extract_strided_slice %144 {offsets = [0, 0], sizes = [8, 128], strides = [1, 1]} : vector<8x256xf32> to vector<8x128xf32>
    %146 = vector.extract_strided_slice %144 {offsets = [0, 128], sizes = [8, 128], strides = [1, 1]} : vector<8x256xf32> to vector<8x128xf32>
    %147 = vector.shape_cast %42 : vector<8x1xi1> to vector<8x1xi1>
    %148 = vector.broadcast %147 : vector<8x1xi1> to vector<8x128xi1>
    %149 = arith.select %148, %145, %146 : vector<8x128xi1>, vector<8x128xf32>
    %150 = vector.extract_strided_slice %36 {offsets = [24, 0], sizes = [8, 128], strides = [1, 1]} : vector<64x128xf32> to vector<8x128xf32>
    %151 = arith.addf %149, %150 : vector<8x128xf32>
    %152 = arith.negf %151 : vector<8x128xf32>
    %153 = math.exp %152 : vector<8x128xf32>
    %cst_24 = arith.constant 1.000000e+00 : f32
    %154 = vector.broadcast %cst_24 : f32 to vector<8x128xf32>
    %155 = arith.addf %154, %153 : vector<8x128xf32>
    %156 = arith.divf %154, %155 : vector<8x128xf32>
    %157 = math.tanh %151 : vector<8x128xf32>
    %158 = arith.select %48, %157, %156 : vector<8x128xi1>, vector<8x128xf32>
    %159 = vector.extract_strided_slice %158 {offsets = [0, 0], sizes = [8, 32], strides = [1, 1]} : vector<8x128xf32> to vector<8x32xf32>
    %160 = vector.extract_strided_slice %158 {offsets = [0, 32], sizes = [8, 32], strides = [1, 1]} : vector<8x128xf32> to vector<8x32xf32>
    %161 = vector.extract_strided_slice %158 {offsets = [0, 64], sizes = [8, 32], strides = [1, 1]} : vector<8x128xf32> to vector<8x32xf32>
    %162 = vector.extract_strided_slice %158 {offsets = [0, 96], sizes = [8, 32], strides = [1, 1]} : vector<8x128xf32> to vector<8x32xf32>
    %163 = arith.mulf %160, %143 : vector<8x32xf32>
    %164 = arith.mulf %159, %161 : vector<8x32xf32>
    %165 = arith.addf %163, %164 : vector<8x32xf32>
    %166 = math.tanh %165 : vector<8x32xf32>
    %167 = arith.mulf %162, %166 : vector<8x32xf32>
    %168 = vector.extract_strided_slice %38 {offsets = [24, 0], sizes = [8, 1], strides = [1, 1]} : vector<64x1xi1> to vector<8x1xi1>
    %169 = vector.shape_cast %168 : vector<8x1xi1> to vector<8x1xi1>
    %170 = vector.broadcast %169 : vector<8x1xi1> to vector<8x32xi1>
    %171 = arith.select %170, %167, %140 : vector<8x32xi1>, vector<8x32xf32>
    %172 = vector.shape_cast %168 : vector<8x1xi1> to vector<8x1xi1>
    %173 = vector.broadcast %172 : vector<8x1xi1> to vector<8x32xi1>
    %174 = arith.select %173, %165, %143 : vector<8x32xi1>, vector<8x32xf32>
    %cst_25 = arith.constant dense<0.000000e+00> : vector<8x256xf32>
    %175 = tpu.matmul %171, %39, %cst_25 {dimension_numbers = #tpu.dot_dimension_numbers<[1], [0], [0], [1], [0, 0, 1, 1], [], []>} : vector<8x32xf32>, vector<32x256xf32>, vector<8x256xf32> -> vector<8x256xf32>
    %176 = vector.extract_strided_slice %175 {offsets = [0, 0], sizes = [8, 128], strides = [1, 1]} : vector<8x256xf32> to vector<8x128xf32>
    %177 = vector.extract_strided_slice %175 {offsets = [0, 128], sizes = [8, 128], strides = [1, 1]} : vector<8x256xf32> to vector<8x128xf32>
    %178 = vector.shape_cast %42 : vector<8x1xi1> to vector<8x1xi1>
    %179 = vector.broadcast %178 : vector<8x1xi1> to vector<8x128xi1>
    %180 = arith.select %179, %176, %177 : vector<8x128xi1>, vector<8x128xf32>
    %181 = vector.extract_strided_slice %36 {offsets = [32, 0], sizes = [8, 128], strides = [1, 1]} : vector<64x128xf32> to vector<8x128xf32>
    %182 = arith.addf %180, %181 : vector<8x128xf32>
    %183 = arith.negf %182 : vector<8x128xf32>
    %184 = math.exp %183 : vector<8x128xf32>
    %cst_26 = arith.constant 1.000000e+00 : f32
    %185 = vector.broadcast %cst_26 : f32 to vector<8x128xf32>
    %186 = arith.addf %185, %184 : vector<8x128xf32>
    %187 = arith.divf %185, %186 : vector<8x128xf32>
    %188 = math.tanh %182 : vector<8x128xf32>
    %189 = arith.select %48, %188, %187 : vector<8x128xi1>, vector<8x128xf32>
    %190 = vector.extract_strided_slice %189 {offsets = [0, 0], sizes = [8, 32], strides = [1, 1]} : vector<8x128xf32> to vector<8x32xf32>
    %191 = vector.extract_strided_slice %189 {offsets = [0, 32], sizes = [8, 32], strides = [1, 1]} : vector<8x128xf32> to vector<8x32xf32>
    %192 = vector.extract_strided_slice %189 {offsets = [0, 64], sizes = [8, 32], strides = [1, 1]} : vector<8x128xf32> to vector<8x32xf32>
    %193 = vector.extract_strided_slice %189 {offsets = [0, 96], sizes = [8, 32], strides = [1, 1]} : vector<8x128xf32> to vector<8x32xf32>
    %194 = arith.mulf %191, %174 : vector<8x32xf32>
    %195 = arith.mulf %190, %192 : vector<8x32xf32>
    %196 = arith.addf %194, %195 : vector<8x32xf32>
    %197 = math.tanh %196 : vector<8x32xf32>
    %198 = arith.mulf %193, %197 : vector<8x32xf32>
    %199 = vector.extract_strided_slice %38 {offsets = [32, 0], sizes = [8, 1], strides = [1, 1]} : vector<64x1xi1> to vector<8x1xi1>
    %200 = vector.shape_cast %199 : vector<8x1xi1> to vector<8x1xi1>
    %201 = vector.broadcast %200 : vector<8x1xi1> to vector<8x32xi1>
    %202 = arith.select %201, %198, %171 : vector<8x32xi1>, vector<8x32xf32>
    %203 = vector.shape_cast %199 : vector<8x1xi1> to vector<8x1xi1>
    %204 = vector.broadcast %203 : vector<8x1xi1> to vector<8x32xi1>
    %205 = arith.select %204, %196, %174 : vector<8x32xi1>, vector<8x32xf32>
    %cst_27 = arith.constant dense<0.000000e+00> : vector<8x256xf32>
    %206 = tpu.matmul %202, %39, %cst_27 {dimension_numbers = #tpu.dot_dimension_numbers<[1], [0], [0], [1], [0, 0, 1, 1], [], []>} : vector<8x32xf32>, vector<32x256xf32>, vector<8x256xf32> -> vector<8x256xf32>
    %207 = vector.extract_strided_slice %206 {offsets = [0, 0], sizes = [8, 128], strides = [1, 1]} : vector<8x256xf32> to vector<8x128xf32>
    %208 = vector.extract_strided_slice %206 {offsets = [0, 128], sizes = [8, 128], strides = [1, 1]} : vector<8x256xf32> to vector<8x128xf32>
    %209 = vector.shape_cast %42 : vector<8x1xi1> to vector<8x1xi1>
    %210 = vector.broadcast %209 : vector<8x1xi1> to vector<8x128xi1>
    %211 = arith.select %210, %207, %208 : vector<8x128xi1>, vector<8x128xf32>
    %212 = vector.extract_strided_slice %36 {offsets = [40, 0], sizes = [8, 128], strides = [1, 1]} : vector<64x128xf32> to vector<8x128xf32>
    %213 = arith.addf %211, %212 : vector<8x128xf32>
    %214 = arith.negf %213 : vector<8x128xf32>
    %215 = math.exp %214 : vector<8x128xf32>
    %cst_28 = arith.constant 1.000000e+00 : f32
    %216 = vector.broadcast %cst_28 : f32 to vector<8x128xf32>
    %217 = arith.addf %216, %215 : vector<8x128xf32>
    %218 = arith.divf %216, %217 : vector<8x128xf32>
    %219 = math.tanh %213 : vector<8x128xf32>
    %220 = arith.select %48, %219, %218 : vector<8x128xi1>, vector<8x128xf32>
    %221 = vector.extract_strided_slice %220 {offsets = [0, 0], sizes = [8, 32], strides = [1, 1]} : vector<8x128xf32> to vector<8x32xf32>
    %222 = vector.extract_strided_slice %220 {offsets = [0, 32], sizes = [8, 32], strides = [1, 1]} : vector<8x128xf32> to vector<8x32xf32>
    %223 = vector.extract_strided_slice %220 {offsets = [0, 64], sizes = [8, 32], strides = [1, 1]} : vector<8x128xf32> to vector<8x32xf32>
    %224 = vector.extract_strided_slice %220 {offsets = [0, 96], sizes = [8, 32], strides = [1, 1]} : vector<8x128xf32> to vector<8x32xf32>
    %225 = arith.mulf %222, %205 : vector<8x32xf32>
    %226 = arith.mulf %221, %223 : vector<8x32xf32>
    %227 = arith.addf %225, %226 : vector<8x32xf32>
    %228 = math.tanh %227 : vector<8x32xf32>
    %229 = arith.mulf %224, %228 : vector<8x32xf32>
    %230 = vector.extract_strided_slice %38 {offsets = [40, 0], sizes = [8, 1], strides = [1, 1]} : vector<64x1xi1> to vector<8x1xi1>
    %231 = vector.shape_cast %230 : vector<8x1xi1> to vector<8x1xi1>
    %232 = vector.broadcast %231 : vector<8x1xi1> to vector<8x32xi1>
    %233 = arith.select %232, %229, %202 : vector<8x32xi1>, vector<8x32xf32>
    %234 = vector.shape_cast %230 : vector<8x1xi1> to vector<8x1xi1>
    %235 = vector.broadcast %234 : vector<8x1xi1> to vector<8x32xi1>
    %236 = arith.select %235, %227, %205 : vector<8x32xi1>, vector<8x32xf32>
    %cst_29 = arith.constant dense<0.000000e+00> : vector<8x256xf32>
    %237 = tpu.matmul %233, %39, %cst_29 {dimension_numbers = #tpu.dot_dimension_numbers<[1], [0], [0], [1], [0, 0, 1, 1], [], []>} : vector<8x32xf32>, vector<32x256xf32>, vector<8x256xf32> -> vector<8x256xf32>
    %238 = vector.extract_strided_slice %237 {offsets = [0, 0], sizes = [8, 128], strides = [1, 1]} : vector<8x256xf32> to vector<8x128xf32>
    %239 = vector.extract_strided_slice %237 {offsets = [0, 128], sizes = [8, 128], strides = [1, 1]} : vector<8x256xf32> to vector<8x128xf32>
    %240 = vector.shape_cast %42 : vector<8x1xi1> to vector<8x1xi1>
    %241 = vector.broadcast %240 : vector<8x1xi1> to vector<8x128xi1>
    %242 = arith.select %241, %238, %239 : vector<8x128xi1>, vector<8x128xf32>
    %243 = vector.extract_strided_slice %36 {offsets = [48, 0], sizes = [8, 128], strides = [1, 1]} : vector<64x128xf32> to vector<8x128xf32>
    %244 = arith.addf %242, %243 : vector<8x128xf32>
    %245 = arith.negf %244 : vector<8x128xf32>
    %246 = math.exp %245 : vector<8x128xf32>
    %cst_30 = arith.constant 1.000000e+00 : f32
    %247 = vector.broadcast %cst_30 : f32 to vector<8x128xf32>
    %248 = arith.addf %247, %246 : vector<8x128xf32>
    %249 = arith.divf %247, %248 : vector<8x128xf32>
    %250 = math.tanh %244 : vector<8x128xf32>
    %251 = arith.select %48, %250, %249 : vector<8x128xi1>, vector<8x128xf32>
    %252 = vector.extract_strided_slice %251 {offsets = [0, 0], sizes = [8, 32], strides = [1, 1]} : vector<8x128xf32> to vector<8x32xf32>
    %253 = vector.extract_strided_slice %251 {offsets = [0, 32], sizes = [8, 32], strides = [1, 1]} : vector<8x128xf32> to vector<8x32xf32>
    %254 = vector.extract_strided_slice %251 {offsets = [0, 64], sizes = [8, 32], strides = [1, 1]} : vector<8x128xf32> to vector<8x32xf32>
    %255 = vector.extract_strided_slice %251 {offsets = [0, 96], sizes = [8, 32], strides = [1, 1]} : vector<8x128xf32> to vector<8x32xf32>
    %256 = arith.mulf %253, %236 : vector<8x32xf32>
    %257 = arith.mulf %252, %254 : vector<8x32xf32>
    %258 = arith.addf %256, %257 : vector<8x32xf32>
    %259 = math.tanh %258 : vector<8x32xf32>
    %260 = arith.mulf %255, %259 : vector<8x32xf32>
    %261 = vector.extract_strided_slice %38 {offsets = [48, 0], sizes = [8, 1], strides = [1, 1]} : vector<64x1xi1> to vector<8x1xi1>
    %262 = vector.shape_cast %261 : vector<8x1xi1> to vector<8x1xi1>
    %263 = vector.broadcast %262 : vector<8x1xi1> to vector<8x32xi1>
    %264 = arith.select %263, %260, %233 : vector<8x32xi1>, vector<8x32xf32>
    %265 = vector.shape_cast %261 : vector<8x1xi1> to vector<8x1xi1>
    %266 = vector.broadcast %265 : vector<8x1xi1> to vector<8x32xi1>
    %267 = arith.select %266, %258, %236 : vector<8x32xi1>, vector<8x32xf32>
    %cst_31 = arith.constant dense<0.000000e+00> : vector<8x256xf32>
    %268 = tpu.matmul %264, %39, %cst_31 {dimension_numbers = #tpu.dot_dimension_numbers<[1], [0], [0], [1], [0, 0, 1, 1], [], []>} : vector<8x32xf32>, vector<32x256xf32>, vector<8x256xf32> -> vector<8x256xf32>
    %269 = vector.extract_strided_slice %268 {offsets = [0, 0], sizes = [8, 128], strides = [1, 1]} : vector<8x256xf32> to vector<8x128xf32>
    %270 = vector.extract_strided_slice %268 {offsets = [0, 128], sizes = [8, 128], strides = [1, 1]} : vector<8x256xf32> to vector<8x128xf32>
    %271 = vector.shape_cast %42 : vector<8x1xi1> to vector<8x1xi1>
    %272 = vector.broadcast %271 : vector<8x1xi1> to vector<8x128xi1>
    %273 = arith.select %272, %269, %270 : vector<8x128xi1>, vector<8x128xf32>
    %274 = vector.extract_strided_slice %36 {offsets = [56, 0], sizes = [8, 128], strides = [1, 1]} : vector<64x128xf32> to vector<8x128xf32>
    %275 = arith.addf %273, %274 : vector<8x128xf32>
    %276 = arith.negf %275 : vector<8x128xf32>
    %277 = math.exp %276 : vector<8x128xf32>
    %cst_32 = arith.constant 1.000000e+00 : f32
    %278 = vector.broadcast %cst_32 : f32 to vector<8x128xf32>
    %279 = arith.addf %278, %277 : vector<8x128xf32>
    %280 = arith.divf %278, %279 : vector<8x128xf32>
    %281 = math.tanh %275 : vector<8x128xf32>
    %282 = arith.select %48, %281, %280 : vector<8x128xi1>, vector<8x128xf32>
    %283 = vector.extract_strided_slice %282 {offsets = [0, 0], sizes = [8, 32], strides = [1, 1]} : vector<8x128xf32> to vector<8x32xf32>
    %284 = vector.extract_strided_slice %282 {offsets = [0, 32], sizes = [8, 32], strides = [1, 1]} : vector<8x128xf32> to vector<8x32xf32>
    %285 = vector.extract_strided_slice %282 {offsets = [0, 64], sizes = [8, 32], strides = [1, 1]} : vector<8x128xf32> to vector<8x32xf32>
    %286 = vector.extract_strided_slice %282 {offsets = [0, 96], sizes = [8, 32], strides = [1, 1]} : vector<8x128xf32> to vector<8x32xf32>
    %287 = arith.mulf %284, %267 : vector<8x32xf32>
    %288 = arith.mulf %283, %285 : vector<8x32xf32>
    %289 = arith.addf %287, %288 : vector<8x32xf32>
    %290 = math.tanh %289 : vector<8x32xf32>
    %291 = arith.mulf %286, %290 : vector<8x32xf32>
    %292 = vector.extract_strided_slice %38 {offsets = [56, 0], sizes = [8, 1], strides = [1, 1]} : vector<64x1xi1> to vector<8x1xi1>
    %293 = vector.shape_cast %292 : vector<8x1xi1> to vector<8x1xi1>
    %294 = vector.broadcast %293 : vector<8x1xi1> to vector<8x32xi1>
    %295 = arith.select %294, %291, %264 : vector<8x32xi1>, vector<8x32xf32>
    %296 = vector.extract_strided_slice %295 {offsets = [0, 0], sizes = [4, 32], strides = [1, 1]} : vector<8x32xf32> to vector<4x32xf32>
    %297 = vector.extract_strided_slice %295 {offsets = [4, 0], sizes = [4, 32], strides = [1, 1]} : vector<8x32xf32> to vector<4x32xf32>
    %298 = tpu.concatenate %296, %297 in 1 : vector<4x32xf32>, vector<4x32xf32> -> vector<4x64xf32>
    %c0_33 = arith.constant 0 : index
    %c0_34 = arith.constant 0 : index
    %299 = vector.load %arg8[%c0_33, %c0_34] : memref<4x64xf32, #tpu.memory_space<vmem>>, vector<4x64xf32>
    tpu.vector_store %arg8[%c0_33, %c0_34], %298 {strides = array<i32>} : memref<4x64xf32, #tpu.memory_space<vmem>>, vector<4x64xf32>,
    %c0_35 = arith.constant 0 : index
    %c0_36 = arith.constant 0 : index
    %300 = vector.load %arg6[%c0_35, %c0_36] : memref<64x4xf32, #tpu.memory_space<vmem>>, vector<64x4xf32>
    %cst_37 = arith.constant dense<0.000000e+00> : vector<4x4xf32>
    %301 = tpu.matmul %298, %300, %cst_37 {dimension_numbers = #tpu.dot_dimension_numbers<[1], [0], [0], [1], [0, 0, 1, 1], [], []>} : vector<4x64xf32>, vector<64x4xf32>, vector<4x4xf32> -> vector<4x4xf32>
    %c0_38 = arith.constant 0 : index
    %c0_39 = arith.constant 0 : index
    %302 = vector.load %arg7[%c0_38, %c0_39] : memref<1x4xf32, #tpu.memory_space<vmem>>, vector<1x4xf32>
    %303 = vector.broadcast %302 : vector<1x4xf32> to vector<4x4xf32>
    %304 = arith.addf %301, %303 : vector<4x4xf32>
    %c0_40 = arith.constant 0 : index
    %c0_41 = arith.constant 0 : index
    %305 = vector.load %arg9[%c0_40, %c0_41] : memref<4x4xf32, #tpu.memory_space<vmem>>, vector<4x4xf32>
    tpu.vector_store %arg9[%c0_40, %c0_41], %304 {strides = array<i32>} : memref<4x4xf32, #tpu.memory_space<vmem>>, vector<4x4xf32>,
    %c0_42 = arith.constant 0 : index
    %c0_43 = arith.constant 0 : index
    %306 = vector.load %arg1[%c0_42, %c0_43] : memref<4x1xi32, #tpu.memory_space<vmem>>, vector<4x1xi32>
    %cst_44 = arith.constant dense<0xFF800000> : vector<4xf32>
    %307 = vector.multi_reduction <maximumf>, %304, %cst_44 [1] : vector<4x4xf32> to vector<4xf32>
    %308 = vector.shape_cast %307 : vector<4xf32> to vector<4x1xf32>
    %309 = vector.broadcast %308 : vector<4x1xf32> to vector<4x4xf32>
    %310 = arith.subf %304, %309 : vector<4x4xf32>
    %311 = math.exp %310 : vector<4x4xf32>
    %cst_45 = arith.constant dense<0.000000e+00> : vector<4xf32>
    %312 = vector.multi_reduction <add>, %311, %cst_45 [1] : vector<4x4xf32> to vector<4xf32>
    %313 = vector.shape_cast %312 : vector<4xf32> to vector<4x1xf32>
    %314 = math.log %313 : vector<4x1xf32>
    %315 = arith.addf %308, %314 : vector<4x1xf32>
    %316 = tpu.iota {dimensions = array<i32: 1>} : vector<4x4xi32>
    %317 = vector.broadcast %306 : vector<4x1xi32> to vector<4x4xi32>
    %318 = arith.cmpi eq, %316, %317 : vector<4x4xi32>
    %319 = arith.extui %318 : vector<4x4xi1> to vector<4x4xi32>
    %320 = arith.sitofp %319 : vector<4x4xi32> to vector<4x4xf32>
    %321 = arith.mulf %320, %304 : vector<4x4xf32>
    %cst_46 = arith.constant dense<0.000000e+00> : vector<4xf32>
    %322 = vector.multi_reduction <add>, %321, %cst_46 [1] : vector<4x4xf32> to vector<4xf32>
    %323 = vector.shape_cast %322 : vector<4xf32> to vector<4x1xf32>
    %324 = arith.subf %323, %315 : vector<4x1xf32>
    %c-1_i32 = arith.constant -1 : i32
    %325 = vector.broadcast %c-1_i32 : i32 to vector<4x1xi32>
    %326 = arith.cmpi ne, %306, %325 : vector<4x1xi32>
    %327 = arith.extui %326 : vector<4x1xi1> to vector<4x1xi32>
    %328 = arith.sitofp %327 : vector<4x1xi32> to vector<4x1xf32>
    %cst_47 = arith.constant 0.000000e+00 : f32
    %329 = vector.broadcast %cst_47 : f32 to vector<4x1xf32>
    %330 = arith.subf %329, %324 : vector<4x1xf32>
    %331 = arith.mulf %330, %328 : vector<4x1xf32>
    %cst_48 = arith.constant dense<0.000000e+00> : vector<1xf32>
    %332 = vector.multi_reduction <add>, %331, %cst_48 [0] : vector<4x1xf32> to vector<1xf32>
    %333 = vector.shape_cast %332 : vector<1xf32> to vector<1x1xf32>
    %cst_49 = arith.constant dense<0.000000e+00> : vector<1xf32>
    %334 = vector.multi_reduction <add>, %328, %cst_49 [0] : vector<4x1xf32> to vector<1xf32>
    %335 = vector.shape_cast %334 : vector<1xf32> to vector<1x1xf32>
    %cst_50 = arith.constant 1.000000e+00 : f32
    %336 = vector.broadcast %cst_50 : f32 to vector<1x1xf32>
    %337 = arith.maximumf %335, %336 : vector<1x1xf32>
    %338 = arith.divf %333, %337 : vector<1x1xf32>
    %c0_51 = arith.constant 0 : index
    %c0_52 = arith.constant 0 : index
    %339 = vector.load %arg10[%c0_51, %c0_52] : memref<1x1xf32, #tpu.memory_space<vmem>>, vector<1x1xf32>
    tpu.vector_store %arg10[%c0_51, %c0_52], %338 {strides = array<i32>} : memref<1x1xf32, #tpu.memory_space<vmem>>, vector<1x1xf32>,
    return
  }
}

</mosaic_0001>

<llo_original>
// kernel: lstm_text_forward.1
$region0: #{lstm_text_forward.1}
  #allocation0 [shape = 'u32[]', space=smem, size = 0x4, offset = 0x4, fixed_abs, tag = 'smem constant byte address 0x4 - core index']
  #allocation1 [shape = 'u32[144,128]{1,0:T(1,128)}', space=vmem, size = 0x12000, scoped, tag = 'internal scratch']
  %s0 = inlined_call_operand.vmem [shape: s32[64,1], index: 0, kind: input, shape index: {}]
  %s1 = inlined_call_operand.vmem [shape: s32[4,1], index: 1, kind: input, shape index: {}]
  %s2 = inlined_call_operand.vmem [shape: f32[50,32], index: 2, kind: input, shape index: {}]
  %s3 = inlined_call_operand.vmem [shape: f32[32,256], index: 3, kind: input, shape index: {}]
  %s4 = inlined_call_operand.vmem [shape: f32[32,256], index: 4, kind: input, shape index: {}]
  %s5 = inlined_call_operand.vmem [shape: f32[1,256], index: 5, kind: input, shape index: {}]
  %s6 = inlined_call_operand.vmem [shape: f32[64,4], index: 6, kind: input, shape index: {}]
  %s7 = inlined_call_operand.vmem [shape: f32[1,4], index: 7, kind: input, shape index: {}]
  %s8 = inlined_call_operand.hbm [shape: f32[4,64], index: 8, kind: output, shape index: {0}]
  %s9 = inlined_call_operand.hbm [shape: f32[4,4], index: 9, kind: output, shape index: {1}]
  %s10 = inlined_call_operand.hbm [shape: f32[1,1], index: 10, kind: output, shape index: {2}]
  %11 = xla_tuple %s8, %s9, %s10
  %s12 = sld [smem:[#allocation0]]
  $region58: #{lstm_text_forward.1} parent=0
    _
  %s14 = ssub.s32 1, %s12
  %s15 = scalar_select 0, %s14, %s12
  $region1: #{lstm_text_forward.1} parent=0
    #allocation2 [shape = 'u8[2048]{0}', space=vmem, size = 0x800, scoped, tag = 'output window, operand 0, single buffered']
    #allocation3 [shape = 's32[1]{0}', space=sflag, size = 0x4, scoped, tag = 'scoped memory for lstm_text_forward.1']
    #allocation4 [shape = 'u8[2048]{0}', space=vmem, size = 0x800, scoped, tag = 'output window, operand 1, single buffered']
    #allocation5 [shape = 's32[1]{0}', space=sflag, size = 0x4, scoped, tag = 'scoped memory for lstm_text_forward.1']
    #allocation6 [shape = 'u8[512]{0}', space=vmem, size = 0x400, scoped, tag = 'output window, operand 2, single buffered']
    %16 = vsyncpa [#allocation3], 0
    %17 = vsyncpa [#allocation5], 0
    // Predicated region
    $region2: #{lstm_text_forward.1} parent=1 // pred_check
      _
    $region3: #{lstm_text_forward.1} parent=1 // pred_check_branch
      %19 = sbr.rel (0) target = $region5
    $region4: #{lstm_text_forward.1} parent=1 // pred_region
      _
    $region5: #{lstm_text_forward.1} parent=1 // pred_fallthru
      _
    // Predicated region
    $region6: #{lstm_text_forward.1} parent=1 // pred_check
      _
    $region7: #{lstm_text_forward.1} parent=1 // pred_check_branch
      %21 = sbr.rel (0) target = $region9
    $region8: #{lstm_text_forward.1} parent=1 // pred_region
      _
    $region9: #{lstm_text_forward.1} parent=1 // pred_fallthru
      _
    // Predicated region
    $region10: #{lstm_text_forward.1} parent=1 // pred_check
      _
    $region11: #{lstm_text_forward.1} parent=1 // pred_check_branch
      %23 = sbr.rel (0) target = $region13
    $region12: #{lstm_text_forward.1} parent=1 // pred_region
      _
    $region13: #{lstm_text_forward.1} parent=1 // pred_fallthru
      _
    // Predicated region
    $region14: #{lstm_text_forward.1} parent=1 // pred_check
      _
    $region15: #{lstm_text_forward.1} parent=1 // pred_check_branch
      %25 = sbr.rel (0) target = $region17
    $region16: #{lstm_text_forward.1} parent=1 // pred_region
      _
    $region17: #{lstm_text_forward.1} parent=1 // pred_fallthru
      _
    // Predicated region
    $region18: #{lstm_text_forward.1} parent=1 // pred_check
      _
    $region19: #{lstm_text_forward.1} parent=1 // pred_check_branch
      %27 = sbr.rel (0) target = $region21
    $region20: #{lstm_text_forward.1} parent=1 // pred_region
      _
    $region21: #{lstm_text_forward.1} parent=1 // pred_fallthru
      _
    // Predicated region
    $region22: #{lstm_text_forward.1} parent=1 // pred_check
      _
    $region23: #{lstm_text_forward.1} parent=1 // pred_check_branch
      %29 = sbr.rel (0) target = $region25
    $region24: #{lstm_text_forward.1} parent=1 // pred_region
      _
    $region25: #{lstm_text_forward.1} parent=1 // pred_fallthru
      _
    // Predicated region
    $region26: #{lstm_text_forward.1} parent=1 // pred_check
      _
    $region27: #{lstm_text_forward.1} parent=1 // pred_check_branch
      %31 = sbr.rel (0) target = $region29
    $region28: #{lstm_text_forward.1} parent=1 // pred_region
      _
    $region29: #{lstm_text_forward.1} parent=1 // pred_fallthru
      _
    // Predicated region
    $region30: #{lstm_text_forward.1} parent=1 // pred_check
      _
    $region31: #{lstm_text_forward.1} parent=1 // pred_check_branch
      %33 = sbr.rel (0) target = $region33
    $region32: #{lstm_text_forward.1} parent=1 // pred_region
      _
    $region33: #{lstm_text_forward.1} parent=1 // pred_fallthru
      _
    %v34 = vld [vmem:[%s0] sm:$0xff]
    %v35 = vld [vmem:[%s0 + $0x8] sm:$0xff]
    %v36 = vld [vmem:[%s0 + $0x10] sm:$0xff]
    %v37 = vld [vmem:[%s0 + $0x18] sm:$0xff]
    %v38 = vld [vmem:[%s0 + $0x20] sm:$0xff]
    %v39 = vld [vmem:[%s0 + $0x28] sm:$0xff]
    %v40 = vld [vmem:[%s0 + $0x30] sm:$0xff]
    %v41 = vld [vmem:[%s0 + $0x38] sm:$0xff]
    %v42 = vlaneseq
    %v43 = vand.u32 %v42, 127
    %44 = vset.pattern.permute.xlu0 0
    %45 = vperm.xlu0 %44, %v34
    %v46 = vpop.permute.xlu0 %45
    %47 = vset.pattern.permute.xlu0 0
    %48 = vperm.xlu0 %47, %v35
    %v49 = vpop.permute.xlu0 %48
    %50 = vset.pattern.permute.xlu0 0
    %51 = vperm.xlu0 %50, %v36
    %v52 = vpop.permute.xlu0 %51
    %53 = vset.pattern.permute.xlu0 0
    %54 = vperm.xlu0 %53, %v37
    %v55 = vpop.permute.xlu0 %54
    %56 = vset.pattern.permute.xlu0 0
    %57 = vperm.xlu0 %56, %v38
    %v58 = vpop.permute.xlu0 %57
    %59 = vset.pattern.permute.xlu0 0
    %60 = vperm.xlu0 %59, %v39
    %v61 = vpop.permute.xlu0 %60
    %62 = vset.pattern.permute.xlu0 0
    %63 = vperm.xlu0 %62, %v40
    %v64 = vpop.permute.xlu0 %63
    %65 = vset.pattern.permute.xlu0 0
    %66 = vperm.xlu0 %65, %v41
    %v67 = vpop.permute.xlu0 %66
    %vm68 = vcmp.eq.s32.totalorder %v43, %v46
    %vm69 = vcmp.eq.s32.totalorder %v43, %v49
    %vm70 = vcmp.eq.s32.totalorder %v43, %v52
    %vm71 = vcmp.eq.s32.totalorder %v43, %v55
    %vm72 = vcmp.eq.s32.totalorder %v43, %v58
    %vm73 = vcmp.eq.s32.totalorder %v43, %v61
    %vm74 = vcmp.eq.s32.totalorder %v43, %v64
    %vm75 = vcmp.eq.s32.totalorder %v43, %v67
    %v76 = vsel %vm68, 1, 0
    %v77 = vsel %vm69, 1, 0
    %v78 = vsel %vm70, 1, 0
    %v79 = vsel %vm71, 1, 0
    %v80 = vsel %vm72, 1, 0
    %v81 = vsel %vm73, 1, 0
    %v82 = vsel %vm74, 1, 0
    %v83 = vsel %vm75, 1, 0
    %v84 = vcvt.s32.f32 %v76
    %v85 = vcvt.s32.f32 %v77
    %v86 = vcvt.s32.f32 %v78
    %v87 = vcvt.s32.f32 %v79
    %v88 = vcvt.s32.f32 %v80
    %v89 = vcvt.s32.f32 %v81
    %v90 = vcvt.s32.f32 %v82
    %v91 = vcvt.s32.f32 %v83
    %v92 = vld [vmem:[%s2] sm:$0xff]
    %v93 = vld [vmem:[%s2 + $0x8] sm:$0xff]
    %v94 = vld [vmem:[%s2 + $0x10] sm:$0xff]
    %v95 = vld [vmem:[%s2 + $0x18] sm:$0xff]
    %v96 = vld [vmem:[%s2 + $0x20] sm:$0xff]
    %v97 = vld [vmem:[%s2 + $0x28] sm:$0xff]
    %v98 = vld [vmem:[%s2 + $0x30] sm:$0x3]
    %vm99 = vcmask 408576
    %v101 = vsel %vm99, %v84, 0
    %v104 = vsel %vm99, %v85, 0
    %v107 = vsel %vm99, %v86, 0
    %v110 = vsel %vm99, %v87, 0
    %v113 = vsel %vm99, %v88, 0
    %v116 = vsel %vm99, %v89, 0
    %v119 = vsel %vm99, %v90, 0
    %v122 = vsel %vm99, %v91, 0
    %vm124 = vcmask 1041408
    %v126 = vsel %vm124, %v98, 0
    %128 = vmatprep.subr.mxu0 0.0
    %129 = vmatpush1.msra.mxu0 %v92
    %130 = vmatprep.subr.mxu0 0.0
    %131 = vmatpush1.msra.mxu0 %v93
    %132 = vmatprep.subr.mxu0 0.0
    %133 = vmatpush1.msra.mxu0 %v94
    %134 = vmatprep.subr.mxu0 0.0
    %135 = vmatpush1.msra.mxu0 %v95
    %136 = vmatprep.subr.mxu0 0.0
    %137 = vmatpush1.msra.mxu0 %v96
    %138 = vmatprep.subr.mxu0 0.0
    %139 = vmatpush1.msra.mxu0 %v97
    %140 = vmatprep.subr.mxu0 0.0
    %141 = vmatpush1.msra.mxu0 %v126
    %142 = vmatprep.subr.mxu0 0.0
    %143 = vmatpush1.msra.mxu0 0.0
    %144 = vmatprep.subr.mxu0 0.0
    %145 = vmatpush1.msra.mxu0 0.0
    %146 = vmatprep.subr.mxu0 0.0
    %147 = vmatpush1.msra.mxu0 0.0
    %148 = vmatprep.subr.mxu0 0.0
    %149 = vmatpush1.msra.mxu0 0.0
    %150 = vmatprep.subr.mxu0 0.0
    %151 = vmatpush1.msra.mxu0 0.0
    %152 = vmatprep.subr.mxu0 0.0
    %153 = vmatpush1.msra.mxu0 0.0
    %154 = vmatprep.subr.mxu0 0.0
    %155 = vmatpush1.msra.mxu0 0.0
    %156 = vmatprep.subr.mxu0 0.0
    %157 = vmatpush1.msra.mxu0 0.0
    %158 = vmatprep.subr.mxu0 0.0
    %159 = vmatpush1.msra.mxu0 0.0
    %160 = vmatprep.subr.mxu0 0.0
    %161 = vmatpush1.msra.mxu0 0.0
    %162 = vmatprep.subr.mxu0 0.0
    %163 = vmatpush1.msra.mxu0 0.0
    %164 = vmatprep.subr.mxu0 0.0
    %165 = vmatpush1.msra.mxu0 0.0
    %166 = vmatprep.subr.mxu0 0.0
    %167 = vmatpush1.msra.mxu0 0.0
    %168 = vmatprep.subr.mxu0 0.0
    %169 = vmatpush1.msra.mxu0 0.0
    %170 = vmatprep.subr.mxu0 0.0
    %171 = vmatpush1.msra.mxu0 0.0
    %172 = vmatprep.subr.mxu0 0.0
    %173 = vmatpush1.msra.mxu0 0.0
    %174 = vmatprep.subr.mxu0 0.0
    %175 = vmatpush1.msra.mxu0 0.0
    %176 = vmatprep.subr.mxu0 0.0
    %177 = vmatpush1.msra.mxu0 0.0
    %178 = vmatprep.subr.mxu0 0.0
    %179 = vmatpush1.msra.mxu0 0.0
    %180 = vmatprep.subr.mxu0 0.0
    %181 = vmatpush1.msra.mxu0 0.0
    %182 = vmatprep.subr.mxu0 0.0
    %183 = vmatpush1.msra.mxu0 0.0
    %184 = vmatprep.subr.mxu0 0.0
    %185 = vmatpush1.msra.mxu0 0.0
    %186 = vmatprep.subr.mxu0 0.0
    %187 = vmatpush1.msra.mxu0 0.0
    %188 = vmatprep.subr.mxu0 0.0
    %189 = vmatpush1.msra.mxu0 0.0
    %190 = vmatprep.subr.mxu0 0.0
    %191 = vmatpush1.msra.mxu0 0.0
    %192 = vmatprep.mubr.f32.mxu0 0.0
    %193 = vmatmul.mubr.f32.gmra.mrb[0].mxu0 %v101
    %v194 = vpop.f32.mrb[0].mxu0
    %v195 = vadd.f32 0.0, %v194
    %v196 = vpop.f32.mrb[0].mxu0
    %197 = vmatprep.mubr.f32.mxu0 0.0
    %198 = vmatmul.mubr.f32.gmra.mrb[0].mxu0 %v104
    %v199 = vpop.f32.mrb[0].mxu0
    %v200 = vadd.f32 0.0, %v199
    %v201 = vpop.f32.mrb[0].mxu0
    %202 = vmatprep.mubr.f32.mxu0 0.0
    %203 = vmatmul.mubr.f32.gmra.mrb[0].mxu0 %v107
    %v204 = vpop.f32.mrb[0].mxu0
    %v205 = vadd.f32 0.0, %v204
    %v206 = vpop.f32.mrb[0].mxu0
    %207 = vmatprep.mubr.f32.mxu0 0.0
    %208 = vmatmul.mubr.f32.gmra.mrb[0].mxu0 %v110
    %v209 = vpop.f32.mrb[0].mxu0
    %v210 = vadd.f32 0.0, %v209
    %v211 = vpop.f32.mrb[0].mxu0
    %212 = vmatprep.mubr.f32.mxu0 0.0
    %213 = vmatmul.mubr.f32.gmra.mrb[0].mxu0 %v113
    %v214 = vpop.f32.mrb[0].mxu0
    %v215 = vadd.f32 0.0, %v214
    %v216 = vpop.f32.mrb[0].mxu0
    %217 = vmatprep.mubr.f32.mxu0 0.0
    %218 = vmatmul.mubr.f32.gmra.mrb[0].mxu0 %v116
    %v219 = vpop.f32.mrb[0].mxu0
    %v220 = vadd.f32 0.0, %v219
    %v221 = vpop.f32.mrb[0].mxu0
    %222 = vmatprep.mubr.f32.mxu0 0.0
    %223 = vmatmul.mubr.f32.gmra.mrb[0].mxu0 %v119
    %v224 = vpop.f32.mrb[0].mxu0
    %v225 = vadd.f32 0.0, %v224
    %v226 = vpop.f32.mrb[0].mxu0
    %227 = vmatprep.mubr.f32.mxu0 0.0
    %228 = vmatmul.mubr.f32.gmra.mrb[0].mxu0 %v122
    %v229 = vpop.f32.mrb[0].mxu0
    %v230 = vadd.f32 0.0, %v229
    %v231 = vpop.f32.mrb[0].mxu0
    %232 = vdwg.mxu0
    %v233 = vld [vmem:[%s3] sm:$0xff]
    %v234 = vld [vmem:[%s3 + $0x8] sm:$0xff]
    %v235 = vld [vmem:[%s3 + $0x10] sm:$0xff]
    %v236 = vld [vmem:[%s3 + $0x18] sm:$0xff]
    %v237 = vld [vmem:[%s3 + $0x20] sm:$0xff]
    %v238 = vld [vmem:[%s3 + $0x28] sm:$0xff]
    %v239 = vld [vmem:[%s3 + $0x30] sm:$0xff]
    %v240 = vld [vmem:[%s3 + $0x38] sm:$0xff]
    %v241 = vld [vmem:[%s5] sm:$0x3]
    %v243 = vlaneseq
    %v244 = vshrl.u32 %v243, 7
    %v245 = vsub.s32 0, %v244
    %v246 = vrot.slane %v241, %v245
    %v247 = vlaneseq
    %v248 = vshrl.u32 %v247, 7
    %v249 = vsub.s32 1, %v248
    %v250 = vrot.slane %v241, %v249
    %vm253 = vcmask 261120
    %v255 = vsel %vm253, %v195, 0
    %v258 = vsel %vm253, %v200, 0
    %v261 = vsel %vm253, %v205, 0
    %v264 = vsel %vm253, %v210, 0
    %v267 = vsel %vm253, %v215, 0
    %v270 = vsel %vm253, %v220, 0
    %v273 = vsel %vm253, %v225, 0
    %v276 = vsel %vm253, %v230, 0
    %278 = vmatprep.subr.mxu0 %v234
    %279 = vmatpush1.msra.mxu0 %v233
    %280 = vmatprep.subr.mxu0 %v236
    %281 = vmatpush1.msra.mxu0 %v235
    %282 = vmatprep.subr.mxu0 %v238
    %283 = vmatpush1.msra.mxu0 %v237
    %284 = vmatprep.subr.mxu0 %v240
    %285 = vmatpush1.msra.mxu0 %v239
    %286 = vmatprep.subr.mxu0 0.0
    %287 = vmatpush1.msra.mxu0 0.0
    %288 = vmatprep.subr.mxu0 0.0
    %289 = vmatpush1.msra.mxu0 0.0
    %290 = vmatprep.subr.mxu0 0.0
    %291 = vmatpush1.msra.mxu0 0.0
    %292 = vmatprep.subr.mxu0 0.0
    %293 = vmatpush1.msra.mxu0 0.0
    %294 = vmatprep.subr.mxu0 0.0
    %295 = vmatpush1.msra.mxu0 0.0
    %296 = vmatprep.subr.mxu0 0.0
    %297 = vmatpush1.msra.mxu0 0.0
    %298 = vmatprep.subr.mxu0 0.0
    %299 = vmatpush1.msra.mxu0 0.0
    %300 = vmatprep.subr.mxu0 0.0
    %301 = vmatpush1.msra.mxu0 0.0
    %302 = vmatprep.subr.mxu0 0.0
    %303 = vmatpush1.msra.mxu0 0.0
    %304 = vmatprep.subr.mxu0 0.0
    %305 = vmatpush1.msra.mxu0 0.0
    %306 = vmatprep.subr.mxu0 0.0
    %307 = vmatpush1.msra.mxu0 0.0
    %308 = vmatprep.subr.mxu0 0.0
    %309 = vmatpush1.msra.mxu0 0.0
    %310 = vmatprep.subr.mxu0 0.0
    %311 = vmatpush1.msra.mxu0 0.0
    %312 = vmatprep.subr.mxu0 0.0
    %313 = vmatpush1.msra.mxu0 0.0
    %314 = vmatprep.subr.mxu0 0.0
    %315 = vmatpush1.msra.mxu0 0.0
    %316 = vmatprep.subr.mxu0 0.0
    %317 = vmatpush1.msra.mxu0 0.0
    %318 = vmatprep.subr.mxu0 0.0
    %319 = vmatpush1.msra.mxu0 0.0
    %320 = vmatprep.subr.mxu0 0.0
    %321 = vmatpush1.msra.mxu0 0.0
    %322 = vmatprep.subr.mxu0 0.0
    %323 = vmatpush1.msra.mxu0 0.0
    %324 = vmatprep.subr.mxu0 0.0
    %325 = vmatpush1.msra.mxu0 0.0
    %326 = vmatprep.subr.mxu0 0.0
    %327 = vmatpush1.msra.mxu0 0.0
    %328 = vmatprep.subr.mxu0 0.0
    %329 = vmatpush1.msra.mxu0 0.0
    %330 = vmatprep.subr.mxu0 0.0
    %331 = vmatpush1.msra.mxu0 0.0
    %332 = vmatprep.subr.mxu0 0.0
    %333 = vmatpush1.msra.mxu0 0.0
    %334 = vmatprep.subr.mxu0 0.0
    %335 = vmatpush1.msra.mxu0 0.0
    %336 = vmatprep.subr.mxu0 0.0
    %337 = vmatpush1.msra.mxu0 0.0
    %338 = vmatprep.subr.mxu0 0.0
    %339 = vmatpush1.msra.mxu0 0.0
    %340 = vmatprep.subr.mxu0 0.0
    %341 = vmatpush1.msra.mxu0 0.0
    %342 = vmatprep.mubr.f32.mxu0 0.0
    %343 = vmatmul.mubr.f32.gmra.mrb[0].mxu0 %v255
    %v344 = vpop.f32.mrb[0].mxu0
    %v345 = vadd.f32 %v246, %v344
    %v346 = vpop.f32.mrb[0].mxu0
    %v347 = vadd.f32 %v250, %v346
    %348 = vmatprep.mubr.f32.mxu0 0.0
    %349 = vmatmul.mubr.f32.gmra.mrb[0].mxu0 %v258
    %v350 = vpop.f32.mrb[0].mxu0
    %v351 = vadd.f32 %v246, %v350
    %v352 = vpop.f32.mrb[0].mxu0
    %v353 = vadd.f32 %v250, %v352
    %354 = vmatprep.mubr.f32.mxu0 0.0
    %355 = vmatmul.mubr.f32.gmra.mrb[0].mxu0 %v261
    %v356 = vpop.f32.mrb[0].mxu0
    %v357 = vadd.f32 %v246, %v356
    %v358 = vpop.f32.mrb[0].mxu0
    %v359 = vadd.f32 %v250, %v358
    %360 = vmatprep.mubr.f32.mxu0 0.0
    %361 = vmatmul.mubr.f32.gmra.mrb[0].mxu0 %v264
    %v362 = vpop.f32.mrb[0].mxu0
    %v363 = vadd.f32 %v246, %v362
    %v364 = vpop.f32.mrb[0].mxu0
    %v365 = vadd.f32 %v250, %v364
    %366 = vmatprep.mubr.f32.mxu0 0.0
    %367 = vmatmul.mubr.f32.gmra.mrb[0].mxu0 %v267
    %v368 = vpop.f32.mrb[0].mxu0
    %v369 = vadd.f32 %v246, %v368
    %v370 = vpop.f32.mrb[0].mxu0
    %v371 = vadd.f32 %v250, %v370
    %372 = vmatprep.mubr.f32.mxu0 0.0
    %373 = vmatmul.mubr.f32.gmra.mrb[0].mxu0 %v270
    %v374 = vpop.f32.mrb[0].mxu0
    %v375 = vadd.f32 %v246, %v374
    %v376 = vpop.f32.mrb[0].mxu0
    %v377 = vadd.f32 %v250, %v376
    %378 = vmatprep.mubr.f32.mxu0 0.0
    %379 = vmatmul.mubr.f32.gmra.mrb[0].mxu0 %v273
    %v380 = vpop.f32.mrb[0].mxu0
    %v381 = vadd.f32 %v246, %v380
    %v382 = vpop.f32.mrb[0].mxu0
    %v383 = vadd.f32 %v250, %v382
    %384 = vmatprep.mubr.f32.mxu0 0.0
    %385 = vmatmul.mubr.f32.gmra.mrb[0].mxu0 %v276
    %v386 = vpop.f32.mrb[0].mxu0
    %v387 = vadd.f32 %v246, %v386
    %v388 = vpop.f32.mrb[0].mxu0
    %v389 = vadd.f32 %v250, %v388
    %390 = vdwg.mxu0
    %v391 = vlaneseq
    %v392 = vshrl.u32 %v391, 7
    %v393 = vadd.s32 %v392, 8
    %v394 = vadd.s32 %v392, 16
    %v395 = vadd.s32 %v392, 24
    %v396 = vadd.s32 %v392, 32
    %v397 = vadd.s32 %v392, 40
    %v398 = vadd.s32 %v392, 48
    %v399 = vadd.s32 %v392, 56
    %vm400 = vcmp.lt.s32.totalorder %v392, 0
    %v401 = vsub.s32 0, %v392
    %v402 = vsel %vm400, %v401, %v392
    %v403 = vshrl.u32 %v402, 3
    %v404 = vand.u32 %v402, 7
    %v405 = vsub.s32 0, %v404
    %v406 = vsel %vm400, %v405, %v404
    %vm407 = vcmp.lt.s32.totalorder %v393, 0
    %v408 = vsub.s32 0, %v393
    %v409 = vsel %vm407, %v408, %v393
    %v410 = vshrl.u32 %v409, 3
    %v411 = vand.u32 %v409, 7
    %v412 = vsub.s32 0, %v411
    %v413 = vsel %vm407, %v412, %v411
    %vm414 = vcmp.lt.s32.totalorder %v394, 0
    %v415 = vsub.s32 0, %v394
    %v416 = vsel %vm414, %v415, %v394
    %v417 = vshrl.u32 %v416, 3
    %v418 = vand.u32 %v416, 7
    %v419 = vsub.s32 0, %v418
    %v420 = vsel %vm414, %v419, %v418
    %vm421 = vcmp.lt.s32.totalorder %v395, 0
    %v422 = vsub.s32 0, %v395
    %v423 = vsel %vm421, %v422, %v395
    %v424 = vshrl.u32 %v423, 3
    %v425 = vand.u32 %v423, 7
    %v426 = vsub.s32 0, %v425
    %v427 = vsel %vm421, %v426, %v425
    %vm428 = vcmp.lt.s32.totalorder %v396, 0
    %v429 = vsub.s32 0, %v396
    %v430 = vsel %vm428, %v429, %v396
    %v431 = vshrl.u32 %v430, 3
    %v432 = vand.u32 %v430, 7
    %v433 = vsub.s32 0, %v432
    %v434 = vsel %vm428, %v433, %v432
    %vm435 = vcmp.lt.s32.totalorder %v397, 0
    %v436 = vsub.s32 0, %v397
    %v437 = vsel %vm435, %v436, %v397
    %v438 = vshrl.u32 %v437, 3
    %v439 = vand.u32 %v437, 7
    %v440 = vsub.s32 0, %v439
    %v441 = vsel %vm435, %v440, %v439
    %vm442 = vcmp.lt.s32.totalorder %v398, 0
    %v443 = vsub.s32 0, %v398
    %v444 = vsel %vm442, %v443, %v398
    %v445 = vshrl.u32 %v444, 3
    %v446 = vand.u32 %v444, 7
    %v447 = vsub.s32 0, %v446
    %v448 = vsel %vm442, %v447, %v446
    %vm449 = vcmp.lt.s32.totalorder %v399, 0
    %v450 = vsub.s32 0, %v399
    %v451 = vsel %vm449, %v450, %v399
    %v452 = vshrl.u32 %v451, 3
    %v453 = vand.u32 %v451, 7
    %v454 = vsub.s32 0, %v453
    %v455 = vsel %vm449, %v454, %v453
    %vm456 = vcmp.ne.s32.totalorder %v406, 0
    %vm457 = vcmp.ne.s32.totalorder %v413, 0
    %vm458 = vcmp.ne.s32.totalorder %v420, 0
    %vm459 = vcmp.ne.s32.totalorder %v427, 0
    %vm460 = vcmp.ne.s32.totalorder %v434, 0
    %vm461 = vcmp.ne.s32.totalorder %v441, 0
    %vm462 = vcmp.ne.s32.totalorder %v448, 0
    %vm463 = vcmp.ne.s32.totalorder %v455, 0
    %vm464 = vcmp.lt.s32.totalorder %v406, 0
    %vm465 = vcmp.lt.s32.totalorder %v413, 0
    %vm466 = vcmp.lt.s32.totalorder %v420, 0
    %vm467 = vcmp.lt.s32.totalorder %v427, 0
    %vm468 = vcmp.lt.s32.totalorder %v434, 0
    %vm469 = vcmp.lt.s32.totalorder %v441, 0
    %vm470 = vcmp.lt.s32.totalorder %v448, 0
    %vm471 = vcmp.lt.s32.totalorder %v455, 0
    %vm472 = vmand %vm464, %vm456
    %vm473 = vmand %vm465, %vm457
    %vm474 = vmand %vm466, %vm458
    %vm475 = vmand %vm467, %vm459
    %vm476 = vmand %vm468, %vm460
    %vm477 = vmand %vm469, %vm461
    %vm478 = vmand %vm470, %vm462
    %vm479 = vmand %vm471, %vm463
    %v480 = vadd.s32 %v406, 8
    %v481 = vadd.s32 %v413, 8
    %v482 = vadd.s32 %v420, 8
    %v483 = vadd.s32 %v427, 8
    %v484 = vadd.s32 %v434, 8
    %v485 = vadd.s32 %v441, 8
    %v486 = vadd.s32 %v448, 8
    %v487 = vadd.s32 %v455, 8
    %v488 = vsel %vm472, %v480, %v406
    %v489 = vsel %vm473, %v481, %v413
    %v490 = vsel %vm474, %v482, %v420
    %v491 = vsel %vm475, %v483, %v427
    %v492 = vsel %vm476, %v484, %v434
    %v493 = vsel %vm477, %v485, %v441
    %v494 = vsel %vm478, %v486, %v448
    %v495 = vsel %vm479, %v487, %v455
    %vm496 = vcmp.lt.s32.totalorder %v488, 4
    %vm497 = vcmp.lt.s32.totalorder %v489, 4
    %vm498 = vcmp.lt.s32.totalorder %v490, 4
    %vm499 = vcmp.lt.s32.totalorder %v491, 4
    %vm500 = vcmp.lt.s32.totalorder %v492, 4
    %vm501 = vcmp.lt.s32.totalorder %v493, 4
    %vm502 = vcmp.lt.s32.totalorder %v494, 4
    %vm503 = vcmp.lt.s32.totalorder %v495, 4
    %v504 = vsel %vm496, 1, 0
    %v505 = vsel %vm497, 1, 0
    %v506 = vsel %vm498, 1, 0
    %v507 = vsel %vm499, 1, 0
    %v508 = vsel %vm500, 1, 0
    %v509 = vsel %vm501, 1, 0
    %v510 = vsel %vm502, 1, 0
    %v511 = vsel %vm503, 1, 0
    %vm512 = vcmp.eq.s32.totalorder %v504, 1
    %vm513 = vcmp.eq.s32.totalorder %v505, 1
    %vm514 = vcmp.eq.s32.totalorder %v506, 1
    %vm515 = vcmp.eq.s32.totalorder %v507, 1
    %vm516 = vcmp.eq.s32.totalorder %v508, 1
    %vm517 = vcmp.eq.s32.totalorder %v509, 1
    %vm518 = vcmp.eq.s32.totalorder %v510, 1
    %vm519 = vcmp.eq.s32.totalorder %v511, 1
    %v520 = vsel %vm512, %v345, %v347
    %v521 = vsel %vm513, %v351, %v353
    %v522 = vsel %vm514, %v357, %v359
    %v523 = vsel %vm515, %v363, %v365
    %v524 = vsel %vm516, %v369, %v371
    %v525 = vsel %vm517, %v375, %v377
    %v526 = vsel %vm518, %v381, %v383
    %v527 = vsel %vm519, %v387, %v389
    %vm528 = vcmp.ne.s32.totalorder %v34, 0
    %vm529 = vcmp.ne.s32.totalorder %v35, 0
    %vm530 = vcmp.ne.s32.totalorder %v36, 0
    %vm531 = vcmp.ne.s32.totalorder %v37, 0
    %vm532 = vcmp.ne.s32.totalorder %v38, 0
    %vm533 = vcmp.ne.s32.totalorder %v39, 0
    %vm534 = vcmp.ne.s32.totalorder %v40, 0
    %vm535 = vcmp.ne.s32.totalorder %v41, 0
    %v536 = vld [vmem:[%s4] sm:$0xff]
    %v537 = vld [vmem:[%s4 + $0x8] sm:$0xff]
    %v538 = vld [vmem:[%s4 + $0x10] sm:$0xff]
    %v539 = vld [vmem:[%s4 + $0x18] sm:$0xff]
    %v540 = vld [vmem:[%s4 + $0x20] sm:$0xff]
    %v541 = vld [vmem:[%s4 + $0x28] sm:$0xff]
    %v542 = vld [vmem:[%s4 + $0x30] sm:$0xff]
    %v543 = vld [vmem:[%s4 + $0x38] sm:$0xff]
    %vm544 = vcmp.lt.s32.totalorder %v392, 4
    %vm545 = vcmp.ge.s32.totalorder %v43, 64
    %vm546 = vcmp.lt.s32.totalorder %v43, 96
    %vm547 = vmand %vm545, %vm546
    %v549 = vsel %vm253, 0.0, 0
    %551 = vmatprep.subr.mxu0 %v537
    %552 = vmatpush1.msra.mxu0 %v536
    %553 = vmatprep.subr.mxu0 %v539
    %554 = vmatpush1.msra.mxu0 %v538
    %555 = vmatprep.subr.mxu0 %v541
    %556 = vmatpush1.msra.mxu0 %v540
    %557 = vmatprep.subr.mxu0 %v543
    %558 = vmatpush1.msra.mxu0 %v542
    %559 = vmatprep.subr.mxu0 0.0
    %560 = vmatpush1.msra.mxu0 0.0
    %561 = vmatprep.subr.mxu0 0.0
    %562 = vmatpush1.msra.mxu0 0.0
    %563 = vmatprep.subr.mxu0 0.0
    %564 = vmatpush1.msra.mxu0 0.0
    %565 = vmatprep.subr.mxu0 0.0
    %566 = vmatpush1.msra.mxu0 0.0
    %567 = vmatprep.subr.mxu0 0.0
    %568 = vmatpush1.msra.mxu0 0.0
    %569 = vmatprep.subr.mxu0 0.0
    %570 = vmatpush1.msra.mxu0 0.0
    %571 = vmatprep.subr.mxu0 0.0
    %572 = vmatpush1.msra.mxu0 0.0
    %573 = vmatprep.subr.mxu0 0.0
    %574 = vmatpush1.msra.mxu0 0.0
    %575 = vmatprep.subr.mxu0 0.0
    %576 = vmatpush1.msra.mxu0 0.0
    %577 = vmatprep.subr.mxu0 0.0
    %578 = vmatpush1.msra.mxu0 0.0
    %579 = vmatprep.subr.mxu0 0.0
    %580 = vmatpush1.msra.mxu0 0.0
    %581 = vmatprep.subr.mxu0 0.0
    %582 = vmatpush1.msra.mxu0 0.0
    %583 = vmatprep.subr.mxu0 0.0
    %584 = vmatpush1.msra.mxu0 0.0
    %585 = vmatprep.subr.mxu0 0.0
    %586 = vmatpush1.msra.mxu0 0.0
    %587 = vmatprep.subr.mxu0 0.0
    %588 = vmatpush1.msra.mxu0 0.0
    %589 = vmatprep.subr.mxu0 0.0
    %590 = vmatpush1.msra.mxu0 0.0
    %591 = vmatprep.subr.mxu0 0.0
    %592 = vmatpush1.msra.mxu0 0.0
    %593 = vmatprep.subr.mxu0 0.0
    %594 = vmatpush1.msra.mxu0 0.0
    %595 = vmatprep.subr.mxu0 0.0
    %596 = vmatpush1.msra.mxu0 0.0
    %597 = vmatprep.subr.mxu0 0.0
    %598 = vmatpush1.msra.mxu0 0.0
    %599 = vmatprep.subr.mxu0 0.0
    %600 = vmatpush1.msra.mxu0 0.0
    %601 = vmatprep.subr.mxu0 0.0
    %602 = vmatpush1.msra.mxu0 0.0
    %603 = vmatprep.subr.mxu0 0.0
    %604 = vmatpush1.msra.mxu0 0.0
    %605 = vmatprep.subr.mxu0 0.0
    %606 = vmatpush1.msra.mxu0 0.0
    %607 = vmatprep.subr.mxu0 0.0
    %608 = vmatpush1.msra.mxu0 0.0
    %609 = vmatprep.subr.mxu0 0.0
    %610 = vmatpush1.msra.mxu0 0.0
    %611 = vmatprep.subr.mxu0 0.0
    %612 = vmatpush1.msra.mxu0 0.0
    %613 = vmatprep.subr.mxu0 0.0
    %614 = vmatpush1.msra.mxu0 0.0
    %615 = vmatprep.mubr.f32.mxu0 0.0
    %616 = vmatmul.mubr.f32.gmra.mrb[0].mxu0 %v549
    %v617 = vpop.f32.mrb[0].mxu0
    %v618 = vadd.f32 0.0, %v617
    %v619 = vpop.f32.mrb[0].mxu0
    %v620 = vadd.f32 0.0, %v619
    %621 = vdwg.mxu0
    %v622 = vsel %vm544, 1, 0
    %vm623 = vcmp.eq.s32.totalorder %v622, 1
    %v624 = vsel %vm623, %v618, %v620
    %v625 = vadd.f32 %v624, %v520
    %v626 = vxor.u32 %v625, 2147483648
    %v627 = vmul.f32 %v626, 1.442695
    %v628 = vpow.pop %v627
    %v629 = vadd.f32 %v628, 1.0
    %v630 = vrcp.pop %v629
    %v631 = vmul.f32 1.0, %v630
    %v632 = vtanh.pop %v625
    %v633 = vsel %vm547, %v632, %v631
    %v634 = vmul.f32 %v633, 0.0
    %636 = vrot.lane.b32.xlu0 %v633, 64
    %v637 = vpop.permute.xlu0 %636
    %v639 = vmul.f32 %v633, %v637
    %641 = vrot.lane.b32.xlu0 %v639, 32
    %v642 = vpop.permute.xlu0 %641
    %v644 = vadd.f32 %v634, %v642
    %v645 = vtanh.pop %v644
    %647 = vrot.lane.b32.xlu0 %v645, 64
    %v648 = vpop.permute.xlu0 %647
    %v650 = vmul.f32 %v633, %v648
    %v651 = vsel %vm528, 1, 0
    %652 = vset.pattern.permute.xlu0 0
    %653 = vperm.xlu0 %652, %v651
    %v654 = vpop.permute.xlu0 %653
    %vm655 = vcmp.eq.s32.totalorder %v654, 1
    %v656 = vsel %vm655, %v650, 0.0
    %v657 = vsel %vm655, %v644, 0.0
    %659 = vrot.lane.b32.xlu0 %v656, 32
    %v660 = vpop.permute.xlu0 %659
    %v661 = vsel %vm253, %v660, 0
    %663 = vmatprep.subr.mxu0 %v537
    %664 = vmatpush1.msra.mxu0 %v536
    %665 = vmatprep.subr.mxu0 %v539
    %666 = vmatpush1.msra.mxu0 %v538
    %667 = vmatprep.subr.mxu0 %v541
    %668 = vmatpush1.msra.mxu0 %v540
    %669 = vmatprep.subr.mxu0 %v543
    %670 = vmatpush1.msra.mxu0 %v542
    %671 = vmatprep.subr.mxu0 0.0
    %672 = vmatpush1.msra.mxu0 0.0
    %673 = vmatprep.subr.mxu0 0.0
    %674 = vmatpush1.msra.mxu0 0.0
    %675 = vmatprep.subr.mxu0 0.0
    %676 = vmatpush1.msra.mxu0 0.0
    %677 = vmatprep.subr.mxu0 0.0
    %678 = vmatpush1.msra.mxu0 0.0
    %679 = vmatprep.subr.mxu0 0.0
    %680 = vmatpush1.msra.mxu0 0.0
    %681 = vmatprep.subr.mxu0 0.0
    %682 = vmatpush1.msra.mxu0 0.0
    %683 = vmatprep.subr.mxu0 0.0
    %684 = vmatpush1.msra.mxu0 0.0
    %685 = vmatprep.subr.mxu0 0.0
    %686 = vmatpush1.msra.mxu0 0.0
    %687 = vmatprep.subr.mxu0 0.0
    %688 = vmatpush1.msra.mxu0 0.0
    %689 = vmatprep.subr.mxu0 0.0
    %690 = vmatpush1.msra.mxu0 0.0
    %691 = vmatprep.subr.mxu0 0.0
    %692 = vmatpush1.msra.mxu0 0.0
    %693 = vmatprep.subr.mxu0 0.0
    %694 = vmatpush1.msra.mxu0 0.0
    %695 = vmatprep.subr.mxu0 0.0
    %696 = vmatpush1.msra.mxu0 0.0
    %697 = vmatprep.subr.mxu0 0.0
    %698 = vmatpush1.msra.mxu0 0.0
    %699 = vmatprep.subr.mxu0 0.0
    %700 = vmatpush1.msra.mxu0 0.0
    %701 = vmatprep.subr.mxu0 0.0
    %702 = vmatpush1.msra.mxu0 0.0
    %703 = vmatprep.subr.mxu0 0.0
    %704 = vmatpush1.msra.mxu0 0.0
    %705 = vmatprep.subr.mxu0 0.0
    %706 = vmatpush1.msra.mxu0 0.0
    %707 = vmatprep.subr.mxu0 0.0
    %708 = vmatpush1.msra.mxu0 0.0
    %709 = vmatprep.subr.mxu0 0.0
    %710 = vmatpush1.msra.mxu0 0.0
    %711 = vmatprep.subr.mxu0 0.0
    %712 = vmatpush1.msra.mxu0 0.0
    %713 = vmatprep.subr.mxu0 0.0
    %714 = vmatpush1.msra.mxu0 0.0
    %715 = vmatprep.subr.mxu0 0.0
    %716 = vmatpush1.msra.mxu0 0.0
    %717 = vmatprep.subr.mxu0 0.0
    %718 = vmatpush1.msra.mxu0 0.0
    %719 = vmatprep.subr.mxu0 0.0
    %720 = vmatpush1.msra.mxu0 0.0
    %721 = vmatprep.subr.mxu0 0.0
    %722 = vmatpush1.msra.mxu0 0.0
    %723 = vmatprep.subr.mxu0 0.0
    %724 = vmatpush1.msra.mxu0 0.0
    %725 = vmatprep.subr.mxu0 0.0
    %726 = vmatpush1.msra.mxu0 0.0
    %727 = vmatprep.mubr.f32.mxu0 0.0
    %728 = vmatmul.mubr.f32.gmra.mrb[0].mxu0 %v661
    %v729 = vpop.f32.mrb[0].mxu0
    %v730 = vadd.f32 0.0, %v729
    %v731 = vpop.f32.mrb[0].mxu0
    %v732 = vadd.f32 0.0, %v731
    %733 = vdwg.mxu0
    %v734 = vsel %vm623, %v730, %v732
    %v735 = vadd.f32 %v734, %v521
    %v736 = vxor.u32 %v735, 2147483648
    %v737 = vmul.f32 %v736, 1.442695
    %v738 = vpow.pop %v737
    %v739 = vadd.f32 %v738, 1.0
    %v740 = vrcp.pop %v739
    %v741 = vmul.f32 1.0, %v740
    %v742 = vtanh.pop %v735
    %v743 = vsel %vm547, %v742, %v741
    %v744 = vmul.f32 %v743, %v657
    %746 = vrot.lane.b32.xlu0 %v743, 64
    %v747 = vpop.permute.xlu0 %746
    %v749 = vmul.f32 %v743, %v747
    %751 = vrot.lane.b32.xlu0 %v749, 32
    %v752 = vpop.permute.xlu0 %751
    %v754 = vadd.f32 %v744, %v752
    %v755 = vtanh.pop %v754
    %757 = vrot.lane.b32.xlu0 %v755, 64
    %v758 = vpop.permute.xlu0 %757
    %v760 = vmul.f32 %v743, %v758
    %v761 = vsel %vm529, 1, 0
    %762 = vset.pattern.permute.xlu0 0
    %763 = vperm.xlu0 %762, %v761
    %v764 = vpop.permute.xlu0 %763
    %vm765 = vcmp.eq.s32.totalorder %v764, 1
    %v766 = vsel %vm765, %v760, %v656
    %v767 = vsel %vm765, %v754, %v657
    %769 = vrot.lane.b32.xlu0 %v766, 32
    %v770 = vpop.permute.xlu0 %769
    %v771 = vsel %vm253, %v770, 0
    %773 = vmatprep.subr.mxu0 %v537
    %774 = vmatpush1.msra.mxu0 %v536
    %775 = vmatprep.subr.mxu0 %v539
    %776 = vmatpush1.msra.mxu0 %v538
    %777 = vmatprep.subr.mxu0 %v541
    %778 = vmatpush1.msra.mxu0 %v540
    %779 = vmatprep.subr.mxu0 %v543
    %780 = vmatpush1.msra.mxu0 %v542
    %781 = vmatprep.subr.mxu0 0.0
    %782 = vmatpush1.msra.mxu0 0.0
    %783 = vmatprep.subr.mxu0 0.0
    %784 = vmatpush1.msra.mxu0 0.0
    %785 = vmatprep.subr.mxu0 0.0
    %786 = vmatpush1.msra.mxu0 0.0
    %787 = vmatprep.subr.mxu0 0.0
    %788 = vmatpush1.msra.mxu0 0.0
    %789 = vmatprep.subr.mxu0 0.0
    %790 = vmatpush1.msra.mxu0 0.0
    %791 = vmatprep.subr.mxu0 0.0
    %792 = vmatpush1.msra.mxu0 0.0
    %793 = vmatprep.subr.mxu0 0.0
    %794 = vmatpush1.msra.mxu0 0.0
    %795 = vmatprep.subr.mxu0 0.0
    %796 = vmatpush1.msra.mxu0 0.0
    %797 = vmatprep.subr.mxu0 0.0
    %798 = vmatpush1.msra.mxu0 0.0
    %799 = vmatprep.subr.mxu0 0.0
    %800 = vmatpush1.msra.mxu0 0.0
    %801 = vmatprep.subr.mxu0 0.0
    %802 = vmatpush1.msra.mxu0 0.0
    %803 = vmatprep.subr.mxu0 0.0
    %804 = vmatpush1.msra.mxu0 0.0
    %805 = vmatprep.subr.mxu0 0.0
    %806 = vmatpush1.msra.mxu0 0.0
    %807 = vmatprep.subr.mxu0 0.0
    %808 = vmatpush1.msra.mxu0 0.0
    %809 = vmatprep.subr.mxu0 0.0
    %810 = vmatpush1.msra.mxu0 0.0
    %811 = vmatprep.subr.mxu0 0.0
    %812 = vmatpush1.msra.mxu0 0.0
    %813 = vmatprep.subr.mxu0 0.0
    %814 = vmatpush1.msra.mxu0 0.0
    %815 = vmatprep.subr.mxu0 0.0
    %816 = vmatpush1.msra.mxu0 0.0
    %817 = vmatprep.subr.mxu0 0.0
    %818 = vmatpush1.msra.mxu0 0.0
    %819 = vmatprep.subr.mxu0 0.0
    %820 = vmatpush1.msra.mxu0 0.0
    %821 = vmatprep.subr.mxu0 0.0
    %822 = vmatpush1.msra.mxu0 0.0
    %823 = vmatprep.subr.mxu0 0.0
    %824 = vmatpush1.msra.mxu0 0.0
    %825 = vmatprep.subr.mxu0 0.0
    %826 = vmatpush1.msra.mxu0 0.0
    %827 = vmatprep.subr.mxu0 0.0
    %828 = vmatpush1.msra.mxu0 0.0
    %829 = vmatprep.subr.mxu0 0.0
    %830 = vmatpush1.msra.mxu0 0.0
    %831 = vmatprep.subr.mxu0 0.0
    %832 = vmatpush1.msra.mxu0 0.0
    %833 = vmatprep.subr.mxu0 0.0
    %834 = vmatpush1.msra.mxu0 0.0
    %835 = vmatprep.subr.mxu0 0.0
    %836 = vmatpush1.msra.mxu0 0.0
    %837 = vmatprep.mubr.f32.mxu0 0.0
    %838 = vmatmul.mubr.f32.gmra.mrb[0].mxu0 %v771
    %v839 = vpop.f32.mrb[0].mxu0
    %v840 = vadd.f32 0.0, %v839
    %v841 = vpop.f32.mrb[0].mxu0
    %v842 = vadd.f32 0.0, %v841
    %843 = vdwg.mxu0
    %v844 = vsel %vm623, %v840, %v842
    %v845 = vadd.f32 %v844, %v522
    %v846 = vxor.u32 %v845, 2147483648
    %v847 = vmul.f32 %v846, 1.442695
    %v848 = vpow.pop %v847
    %v849 = vadd.f32 %v848, 1.0
    %v850 = vrcp.pop %v849
    %v851 = vmul.f32 1.0, %v850
    %v852 = vtanh.pop %v845
    %v853 = vsel %vm547, %v852, %v851
    %v854 = vmul.f32 %v853, %v767
    %856 = vrot.lane.b32.xlu0 %v853, 64
    %v857 = vpop.permute.xlu0 %856
    %v859 = vmul.f32 %v853, %v857
    %861 = vrot.lane.b32.xlu0 %v859, 32
    %v862 = vpop.permute.xlu0 %861
    %v864 = vadd.f32 %v854, %v862
    %v865 = vtanh.pop %v864
    %867 = vrot.lane.b32.xlu0 %v865, 64
    %v868 = vpop.permute.xlu0 %867
    %v870 = vmul.f32 %v853, %v868
    %v871 = vsel %vm530, 1, 0
    %872 = vset.pattern.permute.xlu0 0
    %873 = vperm.xlu0 %872, %v871
    %v874 = vpop.permute.xlu0 %873
    %vm875 = vcmp.eq.s32.totalorder %v874, 1
    %v876 = vsel %vm875, %v870, %v766
    %v877 = vsel %vm875, %v864, %v767
    %879 = vrot.lane.b32.xlu0 %v876, 32
    %v880 = vpop.permute.xlu0 %879
    %v881 = vsel %vm253, %v880, 0
    %883 = vmatprep.subr.mxu0 %v537
    %884 = vmatpush1.msra.mxu0 %v536
    %885 = vmatprep.subr.mxu0 %v539
    %886 = vmatpush1.msra.mxu0 %v538
    %887 = vmatprep.subr.mxu0 %v541
    %888 = vmatpush1.msra.mxu0 %v540
    %889 = vmatprep.subr.mxu0 %v543
    %890 = vmatpush1.msra.mxu0 %v542
    %891 = vmatprep.subr.mxu0 0.0
    %892 = vmatpush1.msra.mxu0 0.0
    %893 = vmatprep.subr.mxu0 0.0
    %894 = vmatpush1.msra.mxu0 0.0
    %895 = vmatprep.subr.mxu0 0.0
    %896 = vmatpush1.msra.mxu0 0.0
    %897 = vmatprep.subr.mxu0 0.0
    %898 = vmatpush1.msra.mxu0 0.0
    %899 = vmatprep.subr.mxu0 0.0
    %900 = vmatpush1.msra.mxu0 0.0
    %901 = vmatprep.subr.mxu0 0.0
    %902 = vmatpush1.msra.mxu0 0.0
    %903 = vmatprep.subr.mxu0 0.0
    %904 = vmatpush1.msra.mxu0 0.0
    %905 = vmatprep.subr.mxu0 0.0
    %906 = vmatpush1.msra.mxu0 0.0
    %907 = vmatprep.subr.mxu0 0.0
    %908 = vmatpush1.msra.mxu0 0.0
    %909 = vmatprep.subr.mxu0 0.0
    %910 = vmatpush1.msra.mxu0 0.0
    %911 = vmatprep.subr.mxu0 0.0
    %912 = vmatpush1.msra.mxu0 0.0
    %913 = vmatprep.subr.mxu0 0.0
    %914 = vmatpush1.msra.mxu0 0.0
    %915 = vmatprep.subr.mxu0 0.0
    %916 = vmatpush1.msra.mxu0 0.0
    %917 = vmatprep.subr.mxu0 0.0
    %918 = vmatpush1.msra.mxu0 0.0
    %919 = vmatprep.subr.mxu0 0.0
    %920 = vmatpush1.msra.mxu0 0.0
    %921 = vmatprep.subr.mxu0 0.0
    %922 = vmatpush1.msra.mxu0 0.0
    %923 = vmatprep.subr.mxu0 0.0
    %924 = vmatpush1.msra.mxu0 0.0
    %925 = vmatprep.subr.mxu0 0.0
    %926 = vmatpush1.msra.mxu0 0.0
    %927 = vmatprep.subr.mxu0 0.0
    %928 = vmatpush1.msra.mxu0 0.0
    %929 = vmatprep.subr.mxu0 0.0
    %930 = vmatpush1.msra.mxu0 0.0
    %931 = vmatprep.subr.mxu0 0.0
    %932 = vmatpush1.msra.mxu0 0.0
    %933 = vmatprep.subr.mxu0 0.0
    %934 = vmatpush1.msra.mxu0 0.0
    %935 = vmatprep.subr.mxu0 0.0
    %936 = vmatpush1.msra.mxu0 0.0
    %937 = vmatprep.subr.mxu0 0.0
    %938 = vmatpush1.msra.mxu0 0.0
    %939 = vmatprep.subr.mxu0 0.0
    %940 = vmatpush1.msra.mxu0 0.0
    %941 = vmatprep.subr.mxu0 0.0
    %942 = vmatpush1.msra.mxu0 0.0
    %943 = vmatprep.subr.mxu0 0.0
    %944 = vmatpush1.msra.mxu0 0.0
    %945 = vmatprep.subr.mxu0 0.0
    %946 = vmatpush1.msra.mxu0 0.0
    %947 = vmatprep.mubr.f32.mxu0 0.0
    %948 = vmatmul.mubr.f32.gmra.mrb[0].mxu0 %v881
    %v949 = vpop.f32.mrb[0].mxu0
    %v950 = vadd.f32 0.0, %v949
    %v951 = vpop.f32.mrb[0].mxu0
    %v952 = vadd.f32 0.0, %v951
    %953 = vdwg.mxu0
    %v954 = vsel %vm623, %v950, %v952
    %v955 = vadd.f32 %v954, %v523
    %v956 = vxor.u32 %v955, 2147483648
    %v957 = vmul.f32 %v956, 1.442695
    %v958 = vpow.pop %v957
    %v959 = vadd.f32 %v958, 1.0
    %v960 = vrcp.pop %v959
    %v961 = vmul.f32 1.0, %v960
    %v962 = vtanh.pop %v955
    %v963 = vsel %vm547, %v962, %v961
    %v964 = vmul.f32 %v963, %v877
    %966 = vrot.lane.b32.xlu0 %v963, 64
    %v967 = vpop.permute.xlu0 %966
    %v969 = vmul.f32 %v963, %v967
    %971 = vrot.lane.b32.xlu0 %v969, 32
    %v972 = vpop.permute.xlu0 %971
    %v974 = vadd.f32 %v964, %v972
    %v975 = vtanh.pop %v974
    %977 = vrot.lane.b32.xlu0 %v975, 64
    %v978 = vpop.permute.xlu0 %977
    %v980 = vmul.f32 %v963, %v978
    %v981 = vsel %vm531, 1, 0
    %982 = vset.pattern.permute.xlu0 0
    %983 = vperm.xlu0 %982, %v981
    %v984 = vpop.permute.xlu0 %983
    %vm985 = vcmp.eq.s32.totalorder %v984, 1
    %v986 = vsel %vm985, %v980, %v876
    %v987 = vsel %vm985, %v974, %v877
    %989 = vrot.lane.b32.xlu0 %v986, 32
    %v990 = vpop.permute.xlu0 %989
    %v991 = vsel %vm253, %v990, 0
    %993 = vmatprep.subr.mxu0 %v537
    %994 = vmatpush1.msra.mxu0 %v536
    %995 = vmatprep.subr.mxu0 %v539
    %996 = vmatpush1.msra.mxu0 %v538
    %997 = vmatprep.subr.mxu0 %v541
    %998 = vmatpush1.msra.mxu0 %v540
    %999 = vmatprep.subr.mxu0 %v543
    %1000 = vmatpush1.msra.mxu0 %v542
    %1001 = vmatprep.subr.mxu0 0.0
    %1002 = vmatpush1.msra.mxu0 0.0
    %1003 = vmatprep.subr.mxu0 0.0
    %1004 = vmatpush1.msra.mxu0 0.0
    %1005 = vmatprep.subr.mxu0 0.0
    %1006 = vmatpush1.msra.mxu0 0.0
    %1007 = vmatprep.subr.mxu0 0.0
    %1008 = vmatpush1.msra.mxu0 0.0
    %1009 = vmatprep.subr.mxu0 0.0
    %1010 = vmatpush1.msra.mxu0 0.0
    %1011 = vmatprep.subr.mxu0 0.0
    %1012 = vmatpush1.msra.mxu0 0.0
    %1013 = vmatprep.subr.mxu0 0.0
    %1014 = vmatpush1.msra.mxu0 0.0
    %1015 = vmatprep.subr.mxu0 0.0
    %1016 = vmatpush1.msra.mxu0 0.0
    %1017 = vmatprep.subr.mxu0 0.0
    %1018 = vmatpush1.msra.mxu0 0.0
    %1019 = vmatprep.subr.mxu0 0.0
    %1020 = vmatpush1.msra.mxu0 0.0
    %1021 = vmatprep.subr.mxu0 0.0
    %1022 = vmatpush1.msra.mxu0 0.0
    %1023 = vmatprep.subr.mxu0 0.0
    %1024 = vmatpush1.msra.mxu0 0.0
    %1025 = vmatprep.subr.mxu0 0.0
    %1026 = vmatpush1.msra.mxu0 0.0
    %1027 = vmatprep.subr.mxu0 0.0
    %1028 = vmatpush1.msra.mxu0 0.0
    %1029 = vmatprep.subr.mxu0 0.0
    %1030 = vmatpush1.msra.mxu0 0.0
    %1031 = vmatprep.subr.mxu0 0.0
    %1032 = vmatpush1.msra.mxu0 0.0
    %1033 = vmatprep.subr.mxu0 0.0
    %1034 = vmatpush1.msra.mxu0 0.0
    %1035 = vmatprep.subr.mxu0 0.0
    %1036 = vmatpush1.msra.mxu0 0.0
    %1037 = vmatprep.subr.mxu0 0.0
    %1038 = vmatpush1.msra.mxu0 0.0
    %1039 = vmatprep.subr.mxu0 0.0
    %1040 = vmatpush1.msra.mxu0 0.0
    %1041 = vmatprep.subr.mxu0 0.0
    %1042 = vmatpush1.msra.mxu0 0.0
    %1043 = vmatprep.subr.mxu0 0.0
    %1044 = vmatpush1.msra.mxu0 0.0
    %1045 = vmatprep.subr.mxu0 0.0
    %1046 = vmatpush1.msra.mxu0 0.0
    %1047 = vmatprep.subr.mxu0 0.0
    %1048 = vmatpush1.msra.mxu0 0.0
    %1049 = vmatprep.subr.mxu0 0.0
    %1050 = vmatpush1.msra.mxu0 0.0
    %1051 = vmatprep.subr.mxu0 0.0
    %1052 = vmatpush1.msra.mxu0 0.0
    %1053 = vmatprep.subr.mxu0 0.0
    %1054 = vmatpush1.msra.mxu0 0.0
    %1055 = vmatprep.subr.mxu0 0.0
    %1056 = vmatpush1.msra.mxu0 0.0
    %1057 = vmatprep.mubr.f32.mxu0 0.0
    %1058 = vmatmul.mubr.f32.gmra.mrb[0].mxu0 %v991
    %v1059 = vpop.f32.mrb[0].mxu0
    %v1060 = vadd.f32 0.0, %v1059
    %v1061 = vpop.f32.mrb[0].mxu0
    %v1062 = vadd.f32 0.0, %v1061
    %1063 = vdwg.mxu0
    %v1064 = vsel %vm623, %v1060, %v1062
    %v1065 = vadd.f32 %v1064, %v524
    %v1066 = vxor.u32 %v1065, 2147483648
    %v1067 = vmul.f32 %v1066, 1.442695
    %v1068 = vpow.pop %v1067
    %v1069 = vadd.f32 %v1068, 1.0
    %v1070 = vrcp.pop %v1069
    %v1071 = vmul.f32 1.0, %v1070
    %v1072 = vtanh.pop %v1065
    %v1073 = vsel %vm547, %v1072, %v1071
    %v1074 = vmul.f32 %v1073, %v987
    %1076 = vrot.lane.b32.xlu0 %v1073, 64
    %v1077 = vpop.permute.xlu0 %1076
    %v1079 = vmul.f32 %v1073, %v1077
    %1081 = vrot.lane.b32.xlu0 %v1079, 32
    %v1082 = vpop.permute.xlu0 %1081
    %v1084 = vadd.f32 %v1074, %v1082
    %v1085 = vtanh.pop %v1084
    %1087 = vrot.lane.b32.xlu0 %v1085, 64
    %v1088 = vpop.permute.xlu0 %1087
    %v1090 = vmul.f32 %v1073, %v1088
    %v1091 = vsel %vm532, 1, 0
    %1092 = vset.pattern.permute.xlu0 0
    %1093 = vperm.xlu0 %1092, %v1091
    %v1094 = vpop.permute.xlu0 %1093
    %vm1095 = vcmp.eq.s32.totalorder %v1094, 1
    %v1096 = vsel %vm1095, %v1090, %v986
    %v1097 = vsel %vm1095, %v1084, %v987
    %1099 = vrot.lane.b32.xlu0 %v1096, 32
    %v1100 = vpop.permute.xlu0 %1099
    %v1101 = vsel %vm253, %v1100, 0
    %1103 = vmatprep.subr.mxu0 %v537
    %1104 = vmatpush1.msra.mxu0 %v536
    %1105 = vmatprep.subr.mxu0 %v539
    %1106 = vmatpush1.msra.mxu0 %v538
    %1107 = vmatprep.subr.mxu0 %v541
    %1108 = vmatpush1.msra.mxu0 %v540
    %1109 = vmatprep.subr.mxu0 %v543
    %1110 = vmatpush1.msra.mxu0 %v542
    %1111 = vmatprep.subr.mxu0 0.0
    %1112 = vmatpush1.msra.mxu0 0.0
    %1113 = vmatprep.subr.mxu0 0.0
    %1114 = vmatpush1.msra.mxu0 0.0
    %1115 = vmatprep.subr.mxu0 0.0
    %1116 = vmatpush1.msra.mxu0 0.0
    %1117 = vmatprep.subr.mxu0 0.0
    %1118 = vmatpush1.msra.mxu0 0.0
    %1119 = vmatprep.subr.mxu0 0.0
    %1120 = vmatpush1.msra.mxu0 0.0
    %1121 = vmatprep.subr.mxu0 0.0
    %1122 = vmatpush1.msra.mxu0 0.0
    %1123 = vmatprep.subr.mxu0 0.0
    %1124 = vmatpush1.msra.mxu0 0.0
    %1125 = vmatprep.subr.mxu0 0.0
    %1126 = vmatpush1.msra.mxu0 0.0
    %1127 = vmatprep.subr.mxu0 0.0
    %1128 = vmatpush1.msra.mxu0 0.0
    %1129 = vmatprep.subr.mxu0 0.0
    %1130 = vmatpush1.msra.mxu0 0.0
    %1131 = vmatprep.subr.mxu0 0.0
    %1132 = vmatpush1.msra.mxu0 0.0
    %1133 = vmatprep.subr.mxu0 0.0
    %1134 = vmatpush1.msra.mxu0 0.0
    %1135 = vmatprep.subr.mxu0 0.0
    %1136 = vmatpush1.msra.mxu0 0.0
    %1137 = vmatprep.subr.mxu0 0.0
    %1138 = vmatpush1.msra.mxu0 0.0
    %1139 = vmatprep.subr.mxu0 0.0
    %1140 = vmatpush1.msra.mxu0 0.0
    %1141 = vmatprep.subr.mxu0 0.0
    %1142 = vmatpush1.msra.mxu0 0.0
    %1143 = vmatprep.subr.mxu0 0.0
    %1144 = vmatpush1.msra.mxu0 0.0
    %1145 = vmatprep.subr.mxu0 0.0
    %1146 = vmatpush1.msra.mxu0 0.0
    %1147 = vmatprep.subr.mxu0 0.0
    %1148 = vmatpush1.msra.mxu0 0.0
    %1149 = vmatprep.subr.mxu0 0.0
    %1150 = vmatpush1.msra.mxu0 0.0
    %1151 = vmatprep.subr.mxu0 0.0
    %1152 = vmatpush1.msra.mxu0 0.0
    %1153 = vmatprep.subr.mxu0 0.0
    %1154 = vmatpush1.msra.mxu0 0.0
    %1155 = vmatprep.subr.mxu0 0.0
    %1156 = vmatpush1.msra.mxu0 0.0
    %1157 = vmatprep.subr.mxu0 0.0
    %1158 = vmatpush1.msra.mxu0 0.0
    %1159 = vmatprep.subr.mxu0 0.0
    %1160 = vmatpush1.msra.mxu0 0.0
    %1161 = vmatprep.subr.mxu0 0.0
    %1162 = vmatpush1.msra.mxu0 0.0
    %1163 = vmatprep.subr.mxu0 0.0
    %1164 = vmatpush1.msra.mxu0 0.0
    %1165 = vmatprep.subr.mxu0 0.0
    %1166 = vmatpush1.msra.mxu0 0.0
    %1167 = vmatprep.mubr.f32.mxu0 0.0
    %1168 = vmatmul.mubr.f32.gmra.mrb[0].mxu0 %v1101
    %v1169 = vpop.f32.mrb[0].mxu0
    %v1170 = vadd.f32 0.0, %v1169
    %v1171 = vpop.f32.mrb[0].mxu0
    %v1172 = vadd.f32 0.0, %v1171
    %1173 = vdwg.mxu0
    %v1174 = vsel %vm623, %v1170, %v1172
    %v1175 = vadd.f32 %v1174, %v525
    %v1176 = vxor.u32 %v1175, 2147483648
    %v1177 = vmul.f32 %v1176, 1.442695
    %v1178 = vpow.pop %v1177
    %v1179 = vadd.f32 %v1178, 1.0
    %v1180 = vrcp.pop %v1179
    %v1181 = vmul.f32 1.0, %v1180
    %v1182 = vtanh.pop %v1175
    %v1183 = vsel %vm547, %v1182, %v1181
    %v1184 = vmul.f32 %v1183, %v1097
    %1186 = vrot.lane.b32.xlu0 %v1183, 64
    %v1187 = vpop.permute.xlu0 %1186
    %v1189 = vmul.f32 %v1183, %v1187
    %1191 = vrot.lane.b32.xlu0 %v1189, 32
    %v1192 = vpop.permute.xlu0 %1191
    %v1194 = vadd.f32 %v1184, %v1192
    %v1195 = vtanh.pop %v1194
    %1197 = vrot.lane.b32.xlu0 %v1195, 64
    %v1198 = vpop.permute.xlu0 %1197
    %v1200 = vmul.f32 %v1183, %v1198
    %v1201 = vsel %vm533, 1, 0
    %1202 = vset.pattern.permute.xlu0 0
    %1203 = vperm.xlu0 %1202, %v1201
    %v1204 = vpop.permute.xlu0 %1203
    %vm1205 = vcmp.eq.s32.totalorder %v1204, 1
    %v1206 = vsel %vm1205, %v1200, %v1096
    %v1207 = vsel %vm1205, %v1194, %v1097
    %1209 = vrot.lane.b32.xlu0 %v1206, 32
    %v1210 = vpop.permute.xlu0 %1209
    %v1211 = vsel %vm253, %v1210, 0
    %1213 = vmatprep.subr.mxu0 %v537
    %1214 = vmatpush1.msra.mxu0 %v536
    %1215 = vmatprep.subr.mxu0 %v539
    %1216 = vmatpush1.msra.mxu0 %v538
    %1217 = vmatprep.subr.mxu0 %v541
    %1218 = vmatpush1.msra.mxu0 %v540
    %1219 = vmatprep.subr.mxu0 %v543
    %1220 = vmatpush1.msra.mxu0 %v542
    %1221 = vmatprep.subr.mxu0 0.0
    %1222 = vmatpush1.msra.mxu0 0.0
    %1223 = vmatprep.subr.mxu0 0.0
    %1224 = vmatpush1.msra.mxu0 0.0
    %1225 = vmatprep.subr.mxu0 0.0
    %1226 = vmatpush1.msra.mxu0 0.0
    %1227 = vmatprep.subr.mxu0 0.0
    %1228 = vmatpush1.msra.mxu0 0.0
    %1229 = vmatprep.subr.mxu0 0.0
    %1230 = vmatpush1.msra.mxu0 0.0
    %1231 = vmatprep.subr.mxu0 0.0
    %1232 = vmatpush1.msra.mxu0 0.0
    %1233 = vmatprep.subr.mxu0 0.0
    %1234 = vmatpush1.msra.mxu0 0.0
    %1235 = vmatprep.subr.mxu0 0.0
    %1236 = vmatpush1.msra.mxu0 0.0
    %1237 = vmatprep.subr.mxu0 0.0
    %1238 = vmatpush1.msra.mxu0 0.0
    %1239 = vmatprep.subr.mxu0 0.0
    %1240 = vmatpush1.msra.mxu0 0.0
    %1241 = vmatprep.subr.mxu0 0.0
    %1242 = vmatpush1.msra.mxu0 0.0
    %1243 = vmatprep.subr.mxu0 0.0
    %1244 = vmatpush1.msra.mxu0 0.0
    %1245 = vmatprep.subr.mxu0 0.0
    %1246 = vmatpush1.msra.mxu0 0.0
    %1247 = vmatprep.subr.mxu0 0.0
    %1248 = vmatpush1.msra.mxu0 0.0
    %1249 = vmatprep.subr.mxu0 0.0
    %1250 = vmatpush1.msra.mxu0 0.0
    %1251 = vmatprep.subr.mxu0 0.0
    %1252 = vmatpush1.msra.mxu0 0.0
    %1253 = vmatprep.subr.mxu0 0.0
    %1254 = vmatpush1.msra.mxu0 0.0
    %1255 = vmatprep.subr.mxu0 0.0
    %1256 = vmatpush1.msra.mxu0 0.0
    %1257 = vmatprep.subr.mxu0 0.0
    %1258 = vmatpush1.msra.mxu0 0.0
    %1259 = vmatprep.subr.mxu0 0.0
    %1260 = vmatpush1.msra.mxu0 0.0
    %1261 = vmatprep.subr.mxu0 0.0
    %1262 = vmatpush1.msra.mxu0 0.0
    %1263 = vmatprep.subr.mxu0 0.0
    %1264 = vmatpush1.msra.mxu0 0.0
    %1265 = vmatprep.subr.mxu0 0.0
    %1266 = vmatpush1.msra.mxu0 0.0
    %1267 = vmatprep.subr.mxu0 0.0
    %1268 = vmatpush1.msra.mxu0 0.0
    %1269 = vmatprep.subr.mxu0 0.0
    %1270 = vmatpush1.msra.mxu0 0.0
    %1271 = vmatprep.subr.mxu0 0.0
    %1272 = vmatpush1.msra.mxu0 0.0
    %1273 = vmatprep.subr.mxu0 0.0
    %1274 = vmatpush1.msra.mxu0 0.0
    %1275 = vmatprep.subr.mxu0 0.0
    %1276 = vmatpush1.msra.mxu0 0.0
    %1277 = vmatprep.mubr.f32.mxu0 0.0
    %1278 = vmatmul.mubr.f32.gmra.mrb[0].mxu0 %v1211
    %v1279 = vpop.f32.mrb[0].mxu0
    %v1280 = vadd.f32 0.0, %v1279
    %v1281 = vpop.f32.mrb[0].mxu0
    %v1282 = vadd.f32 0.0, %v1281
    %1283 = vdwg.mxu0
    %v1284 = vsel %vm623, %v1280, %v1282
    %v1285 = vadd.f32 %v1284, %v526
    %v1286 = vxor.u32 %v1285, 2147483648
    %v1287 = vmul.f32 %v1286, 1.442695
    %v1288 = vpow.pop %v1287
    %v1289 = vadd.f32 %v1288, 1.0
    %v1290 = vrcp.pop %v1289
    %v1291 = vmul.f32 1.0, %v1290
    %v1292 = vtanh.pop %v1285
    %v1293 = vsel %vm547, %v1292, %v1291
    %v1294 = vmul.f32 %v1293, %v1207
    %1296 = vrot.lane.b32.xlu0 %v1293, 64
    %v1297 = vpop.permute.xlu0 %1296
    %v1299 = vmul.f32 %v1293, %v1297
    %1301 = vrot.lane.b32.xlu0 %v1299, 32
    %v1302 = vpop.permute.xlu0 %1301
    %v1304 = vadd.f32 %v1294, %v1302
    %v1305 = vtanh.pop %v1304
    %1307 = vrot.lane.b32.xlu0 %v1305, 64
    %v1308 = vpop.permute.xlu0 %1307
    %v1310 = vmul.f32 %v1293, %v1308
    %v1311 = vsel %vm534, 1, 0
    %1312 = vset.pattern.permute.xlu0 0
    %1313 = vperm.xlu0 %1312, %v1311
    %v1314 = vpop.permute.xlu0 %1313
    %vm1315 = vcmp.eq.s32.totalorder %v1314, 1
    %v1316 = vsel %vm1315, %v1310, %v1206
    %v1317 = vsel %vm1315, %v1304, %v1207
    %1319 = vrot.lane.b32.xlu0 %v1316, 32
    %v1320 = vpop.permute.xlu0 %1319
    %v1321 = vsel %vm253, %v1320, 0
    %1323 = vmatprep.subr.mxu0 %v537
    %1324 = vmatpush1.msra.mxu0 %v536
    %1325 = vmatprep.subr.mxu0 %v539
    %1326 = vmatpush1.msra.mxu0 %v538
    %1327 = vmatprep.subr.mxu0 %v541
    %1328 = vmatpush1.msra.mxu0 %v540
    %1329 = vmatprep.subr.mxu0 %v543
    %1330 = vmatpush1.msra.mxu0 %v542
    %1331 = vmatprep.subr.mxu0 0.0
    %1332 = vmatpush1.msra.mxu0 0.0
    %1333 = vmatprep.subr.mxu0 0.0
    %1334 = vmatpush1.msra.mxu0 0.0
    %1335 = vmatprep.subr.mxu0 0.0
    %1336 = vmatpush1.msra.mxu0 0.0
    %1337 = vmatprep.subr.mxu0 0.0
    %1338 = vmatpush1.msra.mxu0 0.0
    %1339 = vmatprep.subr.mxu0 0.0
    %1340 = vmatpush1.msra.mxu0 0.0
    %1341 = vmatprep.subr.mxu0 0.0
    %1342 = vmatpush1.msra.mxu0 0.0
    %1343 = vmatprep.subr.mxu0 0.0
    %1344 = vmatpush1.msra.mxu0 0.0
    %1345 = vmatprep.subr.mxu0 0.0
    %1346 = vmatpush1.msra.mxu0 0.0
    %1347 = vmatprep.subr.mxu0 0.0
    %1348 = vmatpush1.msra.mxu0 0.0
    %1349 = vmatprep.subr.mxu0 0.0
    %1350 = vmatpush1.msra.mxu0 0.0
    %1351 = vmatprep.subr.mxu0 0.0
    %1352 = vmatpush1.msra.mxu0 0.0
    %1353 = vmatprep.subr.mxu0 0.0
    %1354 = vmatpush1.msra.mxu0 0.0
    %1355 = vmatprep.subr.mxu0 0.0
    %1356 = vmatpush1.msra.mxu0 0.0
    %1357 = vmatprep.subr.mxu0 0.0
    %1358 = vmatpush1.msra.mxu0 0.0
    %1359 = vmatprep.subr.mxu0 0.0
    %1360 = vmatpush1.msra.mxu0 0.0
    %1361 = vmatprep.subr.mxu0 0.0
    %1362 = vmatpush1.msra.mxu0 0.0
    %1363 = vmatprep.subr.mxu0 0.0
    %1364 = vmatpush1.msra.mxu0 0.0
    %1365 = vmatprep.subr.mxu0 0.0
    %1366 = vmatpush1.msra.mxu0 0.0
    %1367 = vmatprep.subr.mxu0 0.0
    %1368 = vmatpush1.msra.mxu0 0.0
    %1369 = vmatprep.subr.mxu0 0.0
    %1370 = vmatpush1.msra.mxu0 0.0
    %1371 = vmatprep.subr.mxu0 0.0
    %1372 = vmatpush1.msra.mxu0 0.0
    %1373 = vmatprep.subr.mxu0 0.0
    %1374 = vmatpush1.msra.mxu0 0.0
    %1375 = vmatprep.subr.mxu0 0.0
    %1376 = vmatpush1.msra.mxu0 0.0
    %1377 = vmatprep.subr.mxu0 0.0
    %1378 = vmatpush1.msra.mxu0 0.0
    %1379 = vmatprep.subr.mxu0 0.0
    %1380 = vmatpush1.msra.mxu0 0.0
    %1381 = vmatprep.subr.mxu0 0.0
    %1382 = vmatpush1.msra.mxu0 0.0
    %1383 = vmatprep.subr.mxu0 0.0
    %1384 = vmatpush1.msra.mxu0 0.0
    %1385 = vmatprep.subr.mxu0 0.0
    %1386 = vmatpush1.msra.mxu0 0.0
    %1387 = vmatprep.mubr.f32.mxu0 0.0
    %1388 = vmatmul.mubr.f32.gmra.mrb[0].mxu0 %v1321
    %v1389 = vpop.f32.mrb[0].mxu0
    %v1390 = vadd.f32 0.0, %v1389
    %v1391 = vpop.f32.mrb[0].mxu0
    %v1392 = vadd.f32 0.0, %v1391
    %1393 = vdwg.mxu0
    %v1394 = vsel %vm623, %v1390, %v1392
    %v1395 = vadd.f32 %v1394, %v527
    %v1396 = vxor.u32 %v1395, 2147483648
    %v1397 = vmul.f32 %v1396, 1.442695
    %v1398 = vpow.pop %v1397
    %v1399 = vadd.f32 %v1398, 1.0
    %v1400 = vrcp.pop %v1399
    %v1401 = vmul.f32 1.0, %v1400
    %v1402 = vtanh.pop %v1395
    %v1403 = vsel %vm547, %v1402, %v1401
    %v1404 = vmul.f32 %v1403, %v1317
    %1406 = vrot.lane.b32.xlu0 %v1403, 64
    %v1407 = vpop.permute.xlu0 %1406
    %v1409 = vmul.f32 %v1403, %v1407
    %1411 = vrot.lane.b32.xlu0 %v1409, 32
    %v1412 = vpop.permute.xlu0 %1411
    %v1414 = vadd.f32 %v1404, %v1412
    %v1415 = vtanh.pop %v1414
    %1417 = vrot.lane.b32.xlu0 %v1415, 64
    %v1418 = vpop.permute.xlu0 %1417
    %v1420 = vmul.f32 %v1403, %v1418
    %v1421 = vsel %vm535, 1, 0
    %1422 = vset.pattern.permute.xlu0 0
    %1423 = vperm.xlu0 %1422, %v1421
    %v1424 = vpop.permute.xlu0 %1423
    %vm1425 = vcmp.eq.s32.totalorder %v1424, 1
    %v1426 = vsel %vm1425, %v1420, %v1316
    %1428 = vrot.lane.b32.xlu0 %v1426, 32
    %v1429 = vpop.permute.xlu0 %1428
    %v1431 = vrot.slane %v1426, 4
    %1432 = vrot.lane.b32.xlu0 %v1431, 64
    %v1433 = vpop.permute.xlu0 %1432
    %v1435 = vsel %vm253, %v1429, %v1433
    %vm1436 = vcmask 519168
    %1437 = vst.msk [vmem:[#allocation2] sm:$0xf] %vm1436, %v1435
    %v1438 = vld [vmem:[%s6] sm:$0xff]
    %v1439 = vld [vmem:[%s6 + $0x8] sm:$0xff]
    %v1440 = vld [vmem:[%s6 + $0x10] sm:$0xff]
    %v1441 = vld [vmem:[%s6 + $0x18] sm:$0xff]
    %v1442 = vld [vmem:[%s6 + $0x20] sm:$0xff]
    %v1443 = vld [vmem:[%s6 + $0x28] sm:$0xff]
    %v1444 = vld [vmem:[%s6 + $0x30] sm:$0xff]
    %v1445 = vld [vmem:[%s6 + $0x38] sm:$0xff]
    %v1446 = vld [vmem:[%s7] sm:$0x1]
    %v1448 = vlaneseq
    %v1449 = vshrl.u32 %v1448, 7
    %v1450 = vsub.s32 0, %v1449
    %v1451 = vrot.slane %v1446, %v1450
    %vm1453 = vcmask 523264
    %v1455 = vsel %vm1453, %v1435, 0
    %1457 = vmatprep.subr.mxu0 0.0
    %1458 = vmatpush1.msra.mxu0 %v1438
    %1459 = vmatprep.subr.mxu0 0.0
    %1460 = vmatpush1.msra.mxu0 %v1439
    %1461 = vmatprep.subr.mxu0 0.0
    %1462 = vmatpush1.msra.mxu0 %v1440
    %1463 = vmatprep.subr.mxu0 0.0
    %1464 = vmatpush1.msra.mxu0 %v1441
    %1465 = vmatprep.subr.mxu0 0.0
    %1466 = vmatpush1.msra.mxu0 %v1442
    %1467 = vmatprep.subr.mxu0 0.0
    %1468 = vmatpush1.msra.mxu0 %v1443
    %1469 = vmatprep.subr.mxu0 0.0
    %1470 = vmatpush1.msra.mxu0 %v1444
    %1471 = vmatprep.subr.mxu0 0.0
    %1472 = vmatpush1.msra.mxu0 %v1445
    %1473 = vmatprep.subr.mxu0 0.0
    %1474 = vmatpush1.msra.mxu0 0.0
    %1475 = vmatprep.subr.mxu0 0.0
    %1476 = vmatpush1.msra.mxu0 0.0
    %1477 = vmatprep.subr.mxu0 0.0
    %1478 = vmatpush1.msra.mxu0 0.0
    %1479 = vmatprep.subr.mxu0 0.0
    %1480 = vmatpush1.msra.mxu0 0.0
    %1481 = vmatprep.subr.mxu0 0.0
    %1482 = vmatpush1.msra.mxu0 0.0
    %1483 = vmatprep.subr.mxu0 0.0
    %1484 = vmatpush1.msra.mxu0 0.0
    %1485 = vmatprep.subr.mxu0 0.0
    %1486 = vmatpush1.msra.mxu0 0.0
    %1487 = vmatprep.subr.mxu0 0.0
    %1488 = vmatpush1.msra.mxu0 0.0
    %1489 = vmatprep.subr.mxu0 0.0
    %1490 = vmatpush1.msra.mxu0 0.0
    %1491 = vmatprep.subr.mxu0 0.0
    %1492 = vmatpush1.msra.mxu0 0.0
    %1493 = vmatprep.subr.mxu0 0.0
    %1494 = vmatpush1.msra.mxu0 0.0
    %1495 = vmatprep.subr.mxu0 0.0
    %1496 = vmatpush1.msra.mxu0 0.0
    %1497 = vmatprep.subr.mxu0 0.0
    %1498 = vmatpush1.msra.mxu0 0.0
    %1499 = vmatprep.subr.mxu0 0.0
    %1500 = vmatpush1.msra.mxu0 0.0
    %1501 = vmatprep.subr.mxu0 0.0
    %1502 = vmatpush1.msra.mxu0 0.0
    %1503 = vmatprep.subr.mxu0 0.0
    %1504 = vmatpush1.msra.mxu0 0.0
    %1505 = vmatprep.subr.mxu0 0.0
    %1506 = vmatpush1.msra.mxu0 0.0
    %1507 = vmatprep.subr.mxu0 0.0
    %1508 = vmatpush1.msra.mxu0 0.0
    %1509 = vmatprep.subr.mxu0 0.0
    %1510 = vmatpush1.msra.mxu0 0.0
    %1511 = vmatprep.subr.mxu0 0.0
    %1512 = vmatpush1.msra.mxu0 0.0
    %1513 = vmatprep.subr.mxu0 0.0
    %1514 = vmatpush1.msra.mxu0 0.0
    %1515 = vmatprep.subr.mxu0 0.0
    %1516 = vmatpush1.msra.mxu0 0.0
    %1517 = vmatprep.subr.mxu0 0.0
    %1518 = vmatpush1.msra.mxu0 0.0
    %1519 = vmatprep.subr.mxu0 0.0
    %1520 = vmatpush1.msra.mxu0 0.0
    %1521 = vmatprep.mubr.f32.mxu0 0.0
    %1522 = vmatmul.mubr.f32.gmra.mrb[0].mxu0 %v1455
    %v1523 = vpop.f32.mrb[0].mxu0
    %v1524 = vadd.f32 %v1451, %v1523
    %v1525 = vpop.f32.mrb[0].mxu0
    %1526 = vdwg.mxu0
    %vm1527 = vcmask 27648
    %1528 = vst.msk [vmem:[#allocation4] sm:$0xf] %vm1527, %v1524
    %v1529 = vld [vmem:[%s1] sm:$0xf]
    %v1530 = vsel %vm1527, %v1524, -inf
    %1531 = vmax.xlane.f32.xlu0 %v1530
    %v1532 = vpop.xlane.xlu0 %1531
    %v1533 = vsub.f32 %v1524, %v1532
    %v1534 = vmul.f32 %v1533, 1.442695
    %v1535 = vpow.pop %v1534
    %v1536 = vsel %vm1527, %v1535, 0.0
    %1537 = vadd.xlane.f32.xlu0 %v1536
    %v1538 = vpop.xlane.xlu0 %1537
    %v1539 = vlog2.pop %v1538
    %v1540 = vmul.f32 %v1539, 0.6931472
    %v1541 = vadd.f32 %v1532, %v1540
    %1542 = vset.pattern.permute.xlu0 0
    %1543 = vperm.xlu0 %1542, %v1529
    %v1544 = vpop.permute.xlu0 %1543
    %vm1545 = vcmp.eq.s32.totalorder %v43, %v1544
    %v1546 = vsel %vm1545, 1, 0
    %v1547 = vcvt.s32.f32 %v1546
    %v1548 = vmul.f32 %v1547, %v1524
    %v1549 = vsel %vm1527, %v1548, 0.0
    %1550 = vadd.xlane.f32.xlu0 %v1549
    %v1551 = vpop.xlane.xlu0 %1550
    %v1552 = vsub.f32 %v1551, %v1541
    %vm1553 = vcmp.ne.s32.totalorder %v1529, 4294967295
    %v1554 = vsel %vm1553, 1, 0
    %v1555 = vcvt.s32.f32 %v1554
    %v1556 = vsub.f32 0.0, %v1552
    %v1557 = vmul.f32 %v1556, %v1555
    %vm1558 = vcmask 3072
    %v1559 = vsel %vm1558, %v1557, 0.0
    %v1560 = vrot.slane %v1559, 4
    %v1561 = vadd.f32 %v1559, %v1560
    %v1562 = vrot.slane %v1561, 2
    %v1563 = vadd.f32 %v1561, %v1562
    %v1564 = vrot.slane %v1563, 1
    %v1565 = vadd.f32 %v1563, %v1564
    %v1566 = vsel %vm1558, %v1555, 0.0
    %v1567 = vrot.slane %v1566, 4
    %v1568 = vadd.f32 %v1566, %v1567
    %v1569 = vrot.slane %v1568, 2
    %v1570 = vadd.f32 %v1568, %v1569
    %v1571 = vrot.slane %v1570, 1
    %v1572 = vadd.f32 %v1570, %v1571
    %v1573 = vmax.f32 %v1572, 1.0
    %v1574 = vrcp.pop %v1573
    %v1575 = vmul.f32 %v1565, %v1574
    %vm1576 = vcmask 0
    %1577 = vst.msk [vmem:[#allocation6] sm:$0x1] %vm1576, %v1575
    // Predicated region
    $region34: #{lstm_text_forward.1} parent=1 // pred_check
      _
    $region35: #{lstm_text_forward.1} parent=1 // pred_check_branch
      %1579 = sbr.rel (0) target = $region37
    $region36: #{lstm_text_forward.1} parent=1 // pred_region
      %s1581 = ssub.s32 64, 64
      %1582 = vsyncadd [#allocation3], %s1581
      %s1584 = sshll.u32 [#allocation2], 4
      %s1585 = int_to_ptr.vmem [resolvable:$true] %s1584
      %1587 = dma.vmem_to_hbm [thread:$0]  %s1585, 64, %s8, [#allocation3]
    $region37: #{lstm_text_forward.1} parent=1 // pred_fallthru
      _
    // Predicated region
    $region38: #{lstm_text_forward.1} parent=1 // pred_check
      _
    $region39: #{lstm_text_forward.1} parent=1 // pred_check_branch
      %1589 = sbr.rel (0) target = $region41
    $region40: #{lstm_text_forward.1} parent=1 // pred_region
      %s1591 = ssub.s32 64, 64
      %1592 = vsyncadd [#allocation5], %s1591
      %s1594 = sshll.u32 [#allocation4], 4
      %s1595 = int_to_ptr.vmem [resolvable:$true] %s1594
      %1597 = dma.vmem_to_hbm [thread:$0]  %s1595, 64, %s9, [#allocation5]
    $region41: #{lstm_text_forward.1} parent=1 // pred_fallthru
      _
    // Predicated region
    $region42: #{lstm_text_forward.1} parent=1 // pred_check
      _
    $region43: #{lstm_text_forward.1} parent=1 // pred_check_branch
      %1599 = sbr.rel (0) target = $region45
    $region44: #{lstm_text_forward.1} parent=1 // pred_region
      %s1601 = ssub.s32 16, 16
      %1602 = vsyncadd [#allocation5], %s1601
      %s1604 = sshll.u32 [#allocation6], 4
      %s1605 = int_to_ptr.vmem [resolvable:$true] %s1604
      %1607 = dma.vmem_to_hbm [thread:$0]  %s1605, 16, %s10, [#allocation5]
    $region45: #{lstm_text_forward.1} parent=1 // pred_fallthru
      _
    // Predicated region
    $region46: #{lstm_text_forward.1} parent=1 // pred_check
      _
    $region47: #{lstm_text_forward.1} parent=1 // pred_check_branch
      %1609 = sbr.rel (0) target = $region49
    $region48: #{lstm_text_forward.1} parent=1 // pred_region
      %1610 = dma.done [#allocation3], 64
    $region49: #{lstm_text_forward.1} parent=1 // pred_fallthru
      _
    // Predicated region
    $region50: #{lstm_text_forward.1} parent=1 // pred_check
      _
    $region51: #{lstm_text_forward.1} parent=1 // pred_check_branch
      %1612 = sbr.rel (0) target = $region53
    $region52: #{lstm_text_forward.1} parent=1 // pred_region
      %1613 = dma.done [#allocation5], 64
    $region53: #{lstm_text_forward.1} parent=1 // pred_fallthru
      _
    // Predicated region
    $region54: #{lstm_text_forward.1} parent=1 // pred_check
      _
    $region55: #{lstm_text_forward.1} parent=1 // pred_check_branch
      %1615 = sbr.rel (0) target = $region57
    $region56: #{lstm_text_forward.1} parent=1 // pred_region
      %1616 = dma.done [#allocation5], 16
    $region57: #{lstm_text_forward.1} parent=1 // pred_fallthru
      _
    %1617 = vsyncpa [#allocation3], 1
    %1618 = vsyncpa [#allocation5], 1

</llo_original>
